<compile_context>
chip_gen: v7x
topology: tpu7x:2x2x1
jax: 0.10.0
libtpu: 0.0.40
codegen_flags: <defaults>
</compile_context>

<pallas_src>
import numpy as np
import jax
import jax.numpy as jnp
from jax.experimental import pallas as pl
from jax.experimental.pallas import tpu as pltpu

_VMEM_LIMIT = 32 * 1024 * 1024


# ----------------------------- Pallas kernels ------------------------------

def conv_mm_kernel(xT_ref, w_ref, b_ref, o_ref):
    # xT: (K, TN)  w: (Co, K)  b: (Co, 1)  ->  o: (Co, TN)   (lane-dense TN)
    y = jnp.dot(w_ref[...], xT_ref[...], preferred_element_type=jnp.float32)
    o_ref[...] = jnp.maximum(y + b_ref[...], 0.0)


def interp_add_kernel(xs_ref, ah_ref, awt_ref, add_ref, o_ref):
    # xs: (B, Hi, Wi)  ah: (Ho, Hi)  awt: (Wi, Wo)  add: (B, Ho, Wo)
    # Whole batch in a single grid step (maps on the down path are tiny).
    for b in range(xs_ref.shape[0]):
        t = jnp.dot(ah_ref[...], xs_ref[b], preferred_element_type=jnp.float32)
        o_ref[b] = jnp.dot(t, awt_ref[...],
                           preferred_element_type=jnp.float32) + add_ref[b]


def up2_fuse_kernel(xs_ref, x1c_ref, ahh_ref, awth_ref, ahf_ref, awtf_ref,
                    mid_ref, b1_ref, o_ref):
    # Fused tail of the decoder:
    #   xs2 = AHh @ xs @ AWh^T + conv1(x1)          (upsample to H/2, W/2)
    #   up  = AHf @ xs2 @ AWf^T                     (upsample to H,  W)
    #   out = up * mid + b1
    # Neither xs2 nor up ever hit HBM.
    t = jnp.dot(ahh_ref[...], xs_ref[...], preferred_element_type=jnp.float32)
    xs2 = jnp.dot(t, awth_ref[...],
                  preferred_element_type=jnp.float32) + x1c_ref[...]
    u = jnp.dot(ahf_ref[...], xs2, preferred_element_type=jnp.float32)
    up = jnp.dot(u, awtf_ref[...], preferred_element_type=jnp.float32)
    o_ref[...] = up[None, :, :] * mid_ref[...] + b1_ref[...]


# ----------------------------- Pallas wrappers ------------------------------

def _round_up(n, m):
    return ((n + m - 1) // m) * m


def _pick_lane_tile(n, max_tile=2048):
    """Lane-dim tile (multiple of 128) and padded extent; fits all chips."""
    n_pad = _round_up(n, 128)
    if n_pad <= max_tile:
        return n_pad, n_pad
    return max_tile, _round_up(n_pad, max_tile)


def _conv_matmul(xT, w, b, *, tn):
    # xT: (K, Np)  w: (Co, K)  b: (Co, 1)  ->  (Co, Np)
    K, Np = xT.shape
    Co = w.shape[0]
    return pl.pallas_call(
        conv_mm_kernel,
        out_shape=jax.ShapeDtypeStruct((Co, Np), jnp.float32),
        grid=(Np // tn,),
        in_specs=[
            pl.BlockSpec((K, tn), lambda j: (0, j)),
            pl.BlockSpec((Co, K), lambda j: (0, 0)),   # weights stay resident
            pl.BlockSpec((Co, 1), lambda j: (0, 0)),
        ],
        out_specs=pl.BlockSpec((Co, tn), lambda j: (0, j)),
        compiler_params=pltpu.CompilerParams(
            dimension_semantics=("parallel",),
            vmem_limit_bytes=_VMEM_LIMIT),
    )(xT, w, b)


def _pointwise_conv(x3d, w, b, *, ts):
    # x3d: (B, Cin, HWp)  w: (Cout, Cin)  b: (Cout, 1) -> (B, Cout, HWp)
    B, Cin, HWp = x3d.shape
    Cout = w.shape[0]
    return pl.pallas_call(
        conv_mm_kernel,
        out_shape=jax.ShapeDtypeStruct((B, Cout, HWp), jnp.float32),
        grid=(B, HWp // ts),
        in_specs=[
            pl.BlockSpec((None, Cin, ts), lambda bb, j: (bb, 0, j)),
            pl.BlockSpec((Cout, Cin), lambda bb, j: (0, 0)),
            pl.BlockSpec((Cout, 1), lambda bb, j: (0, 0)),
        ],
        out_specs=pl.BlockSpec((None, Cout, ts), lambda bb, j: (bb, 0, j)),
        compiler_params=pltpu.CompilerParams(
            dimension_semantics=("parallel", "parallel"),
            vmem_limit_bytes=_VMEM_LIMIT),
    )(x3d, w, b)


def _interp_add(xs, ah, awt, add):
    # Tiny arrays: one grid step, full arrays resident in VMEM.
    B, Hi, Wi = xs.shape
    Ho, Wo = ah.shape[0], awt.shape[1]
    return pl.pallas_call(
        interp_add_kernel,
        out_shape=jax.ShapeDtypeStruct((B, Ho, Wo), jnp.float32),
    )(xs, ah, awt, add)


def _pick_channel_tile(C, H, W, budget=12 * 1024 * 1024):
    # mid + b1 + out blocks, double-buffered: ~6 * tc * H * W * 4 bytes.
    tc = max(1, min(C, budget // (24 * H * W)))
    while C % tc != 0:
        tc -= 1
    return tc


def _up2_fuse(xs, x1c, ahh, awth, ahf, awtf, mid, b1):
    # xs: (B, H/4, W/4)  x1c: (B, H/2, W/2)  mid/b1: (B, C, H, W)
    B, H4, W4 = xs.shape
    H2, W2 = x1c.shape[1], x1c.shape[2]
    _, C, H, W = mid.shape
    tc = _pick_channel_tile(C, H, W)
    return pl.pallas_call(
        up2_fuse_kernel,
        out_shape=jax.ShapeDtypeStruct((B, C, H, W), jnp.float32),
        grid=(B, C // tc),
        in_specs=[
            pl.BlockSpec((None, H4, W4), lambda bb, c: (bb, 0, 0)),
            pl.BlockSpec((None, H2, W2), lambda bb, c: (bb, 0, 0)),
            pl.BlockSpec((H2, H4), lambda bb, c: (0, 0)),
            pl.BlockSpec((W4, W2), lambda bb, c: (0, 0)),
            pl.BlockSpec((H, H2), lambda bb, c: (0, 0)),
            pl.BlockSpec((W2, W), lambda bb, c: (0, 0)),
            pl.BlockSpec((None, tc, H, W), lambda bb, c: (bb, c, 0, 0)),
            pl.BlockSpec((None, tc, H, W), lambda bb, c: (bb, c, 0, 0)),
        ],
        out_specs=pl.BlockSpec((None, tc, H, W), lambda bb, c: (bb, c, 0, 0)),
        compiler_params=pltpu.CompilerParams(
            dimension_semantics=("parallel", "parallel"),
            vmem_limit_bytes=_VMEM_LIMIT),
    )(xs, x1c, ahh, awth, ahf, awtf, mid, b1)


# ------------------------------- JAX glue -----------------------------------

def _fold_bn(p, eps=1e-5):
    w, b, gamma, beta, mean, var = p
    scale = gamma / jnp.sqrt(var + eps)
    w_f = w * scale[:, None, None, None]
    b_f = b * scale + beta - mean * scale
    return w_f, b_f


def _im2colT(x, k, stride, pad):
    # x: (B, C, H, W) -> patchesT: (C*k*k, B*Ho*Wo), row order (c, kh, kw).
    B, C, H, W = x.shape
    xp = jnp.pad(x, ((0, 0), (0, 0), (pad, pad), (pad, pad)))
    Ho = (H + 2 * pad - k) // stride + 1
    Wo = (W + 2 * pad - k) // stride + 1
    cols = []
    for kh in range(k):
        for kw in range(k):
            cols.append(xp[:, :, kh:kh + stride * Ho:stride,
                           kw:kw + stride * Wo:stride])
    p = jnp.stack(cols, axis=2)                      # (B, C, k*k, Ho, Wo)
    p = p.transpose(1, 2, 0, 3, 4).reshape(C * k * k, B * Ho * Wo)
    return p, Ho, Wo


def conv_bn_relu(x, p, *, stride, pad):
    # Spatial Conv2d(bias=True) + BatchNorm2d(eval) + ReLU via transposed
    # im2col: (Co, K) @ (K, N) with N = B*Ho*Wo lane-dense, tiled over N.
    # Note: the 1->1 convs could drop im2col for a VPU stencil to avoid the
    # k^2 HBM inflation; kept as im2col since these maps are small/downsampled.
    w_f, b_f = _fold_bn(p)
    Co, Ci, k, _ = p[0].shape
    w_mat = w_f.reshape(Co, Ci * k * k)
    b_col = b_f.reshape(Co, 1)
    pT, Ho, Wo = _im2colT(x, k, stride, pad)
    B = x.shape[0]
    N = B * Ho * Wo
    tn, Np = _pick_lane_tile(N)
    if Np > N:
        pT = jnp.pad(pT, ((0, 0), (0, Np - N)))
    out = _conv_matmul(pT, w_mat, b_col, tn=tn)      # (Co, Np)
    out = out[:, :N].reshape(Co, B, Ho, Wo).transpose(1, 0, 2, 3)
    return out                                       # (B, Co, Ho, Wo)


def conv_bn_relu_1x1(x, p):
    # 1x1 conv: plain matmul on the flattened spatial axis (no im2col,
    # no NCHW round trips, lane-dense H*W output).
    w_f, b_f = _fold_bn(p)
    Co, Ci = p[0].shape[0], p[0].shape[1]
    B, _, H, W = x.shape
    HW = H * W
    ts, HWp = _pick_lane_tile(HW)
    x3d = x.reshape(B, Ci, HW)
    if HWp > HW:
        x3d = jnp.pad(x3d, ((0, 0), (0, 0), (0, HWp - HW)))
    out = _pointwise_conv(x3d, w_f.reshape(Co, Ci), b_f.reshape(Co, 1), ts=ts)
    return out[:, :, :HW].reshape(B, Co, H, W)


def _interp_matrix(out_size, in_size):
    # Per-axis linear interpolation matrix (bilinear, align_corners=True).
    if in_size == out_size:
        return jnp.asarray(np.eye(out_size, dtype=np.float32))
    if in_size == 1:
        return jnp.ones((out_size, 1), jnp.float32)
    src = np.arange(out_size, dtype=np.float64) * ((in_size - 1) / (out_size - 1))
    lo = np.clip(np.floor(src).astype(np.int64), 0, in_size - 2)
    frac = (src - lo).astype(np.float32)
    m = np.zeros((out_size, in_size), dtype=np.float32)
    m[np.arange(out_size), lo] += 1.0 - frac
    m[np.arange(out_size), lo + 1] += frac
    return jnp.asarray(m)


def mem_forward(x, params):
    B, Cin, H, W = x.shape
    Cout = params["mid"][0].shape[0]
    assert Cout == Cin, "x * mid + b1 requires out_ch == in_ch"

    b1 = x
    mid = conv_bn_relu_1x1(x, params["mid"])                     # (B, Cout, H, W)
    x1 = conv_bn_relu(x, params["down1"], stride=2, pad=3)       # (B, 1, H/2, W/2)
    x2 = conv_bn_relu(x1, params["down2"], stride=2, pad=2)      # (B, 1, H/4, W/4)
    x3 = conv_bn_relu(x2, params["down3a"], stride=2, pad=1)     # (B, 1, H/8, W/8)
    x3 = conv_bn_relu(x3, params["down3b"], stride=1, pad=1)     # (B, 1, H/8, W/8)

    # upsample x3 -> (H/4, W/4), add conv2(x2)
    x2c = conv_bn_relu(x2, params["conv2"], stride=1, pad=2)
    ah = _interp_matrix(H // 4, x3.shape[2])
    awt = _interp_matrix(W // 4, x3.shape[3]).T
    xs = _interp_add(x3[:, 0], ah, awt, x2c[:, 0])               # (B, H/4, W/4)

    # Fused tail: upsample -> (H/2, W/2) + conv1(x1), upsample -> (H, W),
    # then x * mid + b1 — all in one kernel (no HBM round trips for the
    # intermediate maps).
    x1c = conv_bn_relu(x1, params["conv1"], stride=1, pad=3)     # (B, 1, H/2, W/2)
    ahh = _interp_matrix(H // 2, xs.shape[1])
    awth = _interp_matrix(W // 2, xs.shape[2]).T
    ahf = _interp_matrix(H, H // 2)
    awtf = _interp_matrix(W, W // 2).T
    return _up2_fuse(xs, x1c[:, 0], ahh, awth, ahf, awtf, mid, b1)


# ----------------------------- parameter init -------------------------------

def _conv_bn_params(key, out_ch, in_ch, k):
    ks = jax.random.split(key, 6)
    w = 0.1 * jax.random.normal(ks[0], (out_ch, in_ch, k, k), jnp.float32)
    b = 0.1 * jax.random.normal(ks[1], (out_ch,), jnp.float32)
    gamma = 1.0 + 0.1 * jax.random.normal(ks[2], (out_ch,), jnp.float32)
    beta = 0.1 * jax.random.normal(ks[3], (out_ch,), jnp.float32)
    mean = 0.05 * jax.random.normal(ks[4], (out_ch,), jnp.float32)
    var = 1.0 + 0.1 * jnp.abs(jax.random.normal(ks[5], (out_ch,), jnp.float32))
    return (w, b, gamma, beta, mean, var)


def init_params(key, in_ch, out_ch):
    keys = jax.random.split(key, 7)
    return {
        "mid":    _conv_bn_params(keys[0], out_ch, in_ch, 1),
        "down1":  _conv_bn_params(keys[1], 1, in_ch, 7),
        "down2":  _conv_bn_params(keys[2], 1, 1, 5),
        "down3a": _conv_bn_params(keys[3], 1, 1, 3),
        "down3b": _conv_bn_params(keys[4], 1, 1, 3),
        "conv2":  _conv_bn_params(keys[5], 1, 1, 5),
        "conv1":  _conv_bn_params(keys[6], 1, 1, 7),
    }


# --------------------------------- main --------------------------------------

if __name__ == "__main__":
    B, in_ch, out_ch, H, W = 2, 4, 4, 16, 16
    key = jax.random.PRNGKey(0)
    key, xkey = jax.random.split(key)
    x = jax.random.normal(xkey, (B, in_ch, H, W), jnp.float32)
    params = init_params(key, in_ch, out_ch)

    out = jax.jit(lambda xx: mem_forward(xx, params))(x)
    jax.block_until_ready(out)

    assert out.shape == (B, out_ch, H, W), out.shape
    assert bool(jnp.all(jnp.isfinite(out)))
    print("KERNEL_OK")
</pallas_src>

<mosaic_0001>
module attributes {stable_mosaic.version = 11 : i64} {
  func.func @conv_mm_kernel(%arg0: i32, %arg1: memref<196x128xf32, #tpu.memory_space<vmem>>, %arg2: memref<1x196xf32, #tpu.memory_space<vmem>>, %arg3: memref<1x1xf32, #tpu.memory_space<vmem>>, %arg4: memref<1x128xf32, #tpu.memory_space<vmem>>) attributes {dimension_semantics = [#tpu.dimension_semantics<parallel>], iteration_bounds = array<i64: 1>, scalar_prefetch = 0 : i64, scratch_operands = 0 : i64, tpu.core_type = #tpu.core_type<tc>, window_params = [{transform_indices = @transform_0, window_bounds = array<i64: 196, 128>}, {pipeline_mode = #tpu.pipeline_mode<synchronous>, transform_indices = @transform_1, window_bounds = array<i64: 1, 196>}, {pipeline_mode = #tpu.pipeline_mode<synchronous>, transform_indices = @transform_2, window_bounds = array<i64: 1, 1>}, {transform_indices = @transform_3, window_bounds = array<i64: 1, 128>}]} {
    %c0 = arith.constant 0 : index
    %c0_0 = arith.constant 0 : index
    %0 = vector.load %arg2[%c0, %c0_0] : memref<1x196xf32, #tpu.memory_space<vmem>>, vector<1x196xf32>
    %c0_1 = arith.constant 0 : index
    %c0_2 = arith.constant 0 : index
    %1 = vector.load %arg1[%c0_1, %c0_2] : memref<196x128xf32, #tpu.memory_space<vmem>>, vector<196x128xf32>
    %cst = arith.constant dense<0.000000e+00> : vector<1x128xf32>
    %2 = tpu.matmul %0, %1, %cst {dimension_numbers = #tpu.dot_dimension_numbers<[1], [0], [0], [1], [0, 0, 1, 1], [], []>} : vector<1x196xf32>, vector<196x128xf32>, vector<1x128xf32> -> vector<1x128xf32>
    %c0_3 = arith.constant 0 : index
    %c0_4 = arith.constant 0 : index
    %3 = vector.load %arg3[%c0_3, %c0_4] : memref<1x1xf32, #tpu.memory_space<vmem>>, vector<1x1xf32>
    %4 = vector.broadcast %3 : vector<1x1xf32> to vector<1x128xf32>
    %5 = arith.addf %2, %4 : vector<1x128xf32>
    %cst_5 = arith.constant 0.000000e+00 : f32
    %6 = vector.broadcast %cst_5 : f32 to vector<1x128xf32>
    %7 = arith.maximumf %5, %6 : vector<1x128xf32>
    %c0_6 = arith.constant 0 : index
    %c0_7 = arith.constant 0 : index
    %8 = vector.load %arg4[%c0_6, %c0_7] : memref<1x128xf32, #tpu.memory_space<vmem>>, vector<1x128xf32>
    tpu.vector_store %arg4[%c0_6, %c0_7], %7 {strides = array<i32>} : memref<1x128xf32, #tpu.memory_space<vmem>>, vector<1x128xf32>,
    return
  }
  func.func @transform_0(%arg0: i32) -> (i32, i32) {
    %c0_i32 = arith.constant 0 : i32
    %c0_i32_0 = arith.constant 0 : i32
    return %c0_i32, %arg0 : i32, i32
  }
  func.func @transform_1(%arg0: i32) -> (i32, i32) {
    %c0_i32 = arith.constant 0 : i32
    %c0_i32_0 = arith.constant 0 : i32
    %c0_i32_1 = arith.constant 0 : i32
    return %c0_i32, %c0_i32_0 : i32, i32
  }
  func.func @transform_2(%arg0: i32) -> (i32, i32) {
    %c0_i32 = arith.constant 0 : i32
    %c0_i32_0 = arith.constant 0 : i32
    %c0_i32_1 = arith.constant 0 : i32
    return %c0_i32, %c0_i32_0 : i32, i32
  }
  func.func @transform_3(%arg0: i32) -> (i32, i32) {
    %c0_i32 = arith.constant 0 : i32
    %c0_i32_0 = arith.constant 0 : i32
    return %c0_i32, %arg0 : i32, i32
  }
}

module attributes {stable_mosaic.version = 11 : i64} {
  func.func @conv_mm_kernel(%arg0: i32, %arg1: memref<49x128xf32, #tpu.memory_space<vmem>>, %arg2: memref<1x49xf32, #tpu.memory_space<vmem>>, %arg3: memref<1x1xf32, #tpu.memory_space<vmem>>, %arg4: memref<1x128xf32, #tpu.memory_space<vmem>>) attributes {dimension_semantics = [#tpu.dimension_semantics<parallel>], iteration_bounds = array<i64: 1>, scalar_prefetch = 0 : i64, scratch_operands = 0 : i64, tpu.core_type = #tpu.core_type<tc>, window_params = [{transform_indices = @transform_0, window_bounds = array<i64: 49, 128>}, {pipeline_mode = #tpu.pipeline_mode<synchronous>, transform_indices = @transform_1, window_bounds = array<i64: 1, 49>}, {pipeline_mode = #tpu.pipeline_mode<synchronous>, transform_indices = @transform_2, window_bounds = array<i64: 1, 1>}, {transform_indices = @transform_3, window_bounds = array<i64: 1, 128>}]} {
    %c0 = arith.constant 0 : index
    %c0_0 = arith.constant 0 : index
    %0 = vector.load %arg2[%c0, %c0_0] : memref<1x49xf32, #tpu.memory_space<vmem>>, vector<1x49xf32>
    %c0_1 = arith.constant 0 : index
    %c0_2 = arith.constant 0 : index
    %1 = vector.load %arg1[%c0_1, %c0_2] : memref<49x128xf32, #tpu.memory_space<vmem>>, vector<49x128xf32>
    %cst = arith.constant dense<0.000000e+00> : vector<1x128xf32>
    %2 = tpu.matmul %0, %1, %cst {dimension_numbers = #tpu.dot_dimension_numbers<[1], [0], [0], [1], [0, 0, 1, 1], [], []>} : vector<1x49xf32>, vector<49x128xf32>, vector<1x128xf32> -> vector<1x128xf32>
    %c0_3 = arith.constant 0 : index
    %c0_4 = arith.constant 0 : index
    %3 = vector.load %arg3[%c0_3, %c0_4] : memref<1x1xf32, #tpu.memory_space<vmem>>, vector<1x1xf32>
    %4 = vector.broadcast %3 : vector<1x1xf32> to vector<1x128xf32>
    %5 = arith.addf %2, %4 : vector<1x128xf32>
    %cst_5 = arith.constant 0.000000e+00 : f32
    %6 = vector.broadcast %cst_5 : f32 to vector<1x128xf32>
    %7 = arith.maximumf %5, %6 : vector<1x128xf32>
    %c0_6 = arith.constant 0 : index
    %c0_7 = arith.constant 0 : index
    %8 = vector.load %arg4[%c0_6, %c0_7] : memref<1x128xf32, #tpu.memory_space<vmem>>, vector<1x128xf32>
    tpu.vector_store %arg4[%c0_6, %c0_7], %7 {strides = array<i32>} : memref<1x128xf32, #tpu.memory_space<vmem>>, vector<1x128xf32>,
    return
  }
  func.func @transform_0(%arg0: i32) -> (i32, i32) {
    %c0_i32 = arith.constant 0 : i32
    %c0_i32_0 = arith.constant 0 : i32
    return %c0_i32, %arg0 : i32, i32
  }
  func.func @transform_1(%arg0: i32) -> (i32, i32) {
    %c0_i32 = arith.constant 0 : i32
    %c0_i32_0 = arith.constant 0 : i32
    %c0_i32_1 = arith.constant 0 : i32
    return %c0_i32, %c0_i32_0 : i32, i32
  }
  func.func @transform_2(%arg0: i32) -> (i32, i32) {
    %c0_i32 = arith.constant 0 : i32
    %c0_i32_0 = arith.constant 0 : i32
    %c0_i32_1 = arith.constant 0 : i32
    return %c0_i32, %c0_i32_0 : i32, i32
  }
  func.func @transform_3(%arg0: i32) -> (i32, i32) {
    %c0_i32 = arith.constant 0 : i32
    %c0_i32_0 = arith.constant 0 : i32
    return %c0_i32, %arg0 : i32, i32
  }
}

module attributes {stable_mosaic.version = 11 : i64} {
  func.func @conv_mm_kernel(%arg0: i32, %arg1: memref<25x128xf32, #tpu.memory_space<vmem>>, %arg2: memref<1x25xf32, #tpu.memory_space<vmem>>, %arg3: memref<1x1xf32, #tpu.memory_space<vmem>>, %arg4: memref<1x128xf32, #tpu.memory_space<vmem>>) attributes {dimension_semantics = [#tpu.dimension_semantics<parallel>], iteration_bounds = array<i64: 1>, scalar_prefetch = 0 : i64, scratch_operands = 0 : i64, tpu.core_type = #tpu.core_type<tc>, window_params = [{transform_indices = @transform_0, window_bounds = array<i64: 25, 128>}, {pipeline_mode = #tpu.pipeline_mode<synchronous>, transform_indices = @transform_1, window_bounds = array<i64: 1, 25>}, {pipeline_mode = #tpu.pipeline_mode<synchronous>, transform_indices = @transform_2, window_bounds = array<i64: 1, 1>}, {transform_indices = @transform_3, window_bounds = array<i64: 1, 128>}]} {
    %c0 = arith.constant 0 : index
    %c0_0 = arith.constant 0 : index
    %0 = vector.load %arg2[%c0, %c0_0] : memref<1x25xf32, #tpu.memory_space<vmem>>, vector<1x25xf32>
    %c0_1 = arith.constant 0 : index
    %c0_2 = arith.constant 0 : index
    %1 = vector.load %arg1[%c0_1, %c0_2] : memref<25x128xf32, #tpu.memory_space<vmem>>, vector<25x128xf32>
    %cst = arith.constant dense<0.000000e+00> : vector<1x128xf32>
    %2 = tpu.matmul %0, %1, %cst {dimension_numbers = #tpu.dot_dimension_numbers<[1], [0], [0], [1], [0, 0, 1, 1], [], []>} : vector<1x25xf32>, vector<25x128xf32>, vector<1x128xf32> -> vector<1x128xf32>
    %c0_3 = arith.constant 0 : index
    %c0_4 = arith.constant 0 : index
    %3 = vector.load %arg3[%c0_3, %c0_4] : memref<1x1xf32, #tpu.memory_space<vmem>>, vector<1x1xf32>
    %4 = vector.broadcast %3 : vector<1x1xf32> to vector<1x128xf32>
    %5 = arith.addf %2, %4 : vector<1x128xf32>
    %cst_5 = arith.constant 0.000000e+00 : f32
    %6 = vector.broadcast %cst_5 : f32 to vector<1x128xf32>
    %7 = arith.maximumf %5, %6 : vector<1x128xf32>
    %c0_6 = arith.constant 0 : index
    %c0_7 = arith.constant 0 : index
    %8 = vector.load %arg4[%c0_6, %c0_7] : memref<1x128xf32, #tpu.memory_space<vmem>>, vector<1x128xf32>
    tpu.vector_store %arg4[%c0_6, %c0_7], %7 {strides = array<i32>} : memref<1x128xf32, #tpu.memory_space<vmem>>, vector<1x128xf32>,
    return
  }
  func.func @transform_0(%arg0: i32) -> (i32, i32) {
    %c0_i32 = arith.constant 0 : i32
    %c0_i32_0 = arith.constant 0 : i32
    return %c0_i32, %arg0 : i32, i32
  }
  func.func @transform_1(%arg0: i32) -> (i32, i32) {
    %c0_i32 = arith.constant 0 : i32
    %c0_i32_0 = arith.constant 0 : i32
    %c0_i32_1 = arith.constant 0 : i32
    return %c0_i32, %c0_i32_0 : i32, i32
  }
  func.func @transform_2(%arg0: i32) -> (i32, i32) {
    %c0_i32 = arith.constant 0 : i32
    %c0_i32_0 = arith.constant 0 : i32
    %c0_i32_1 = arith.constant 0 : i32
    return %c0_i32, %c0_i32_0 : i32, i32
  }
  func.func @transform_3(%arg0: i32) -> (i32, i32) {
    %c0_i32 = arith.constant 0 : i32
    %c0_i32_0 = arith.constant 0 : i32
    return %c0_i32, %arg0 : i32, i32
  }
}

module attributes {stable_mosaic.version = 11 : i64} {
  func.func @conv_mm_kernel(%arg0: i32, %arg1: memref<9x128xf32, #tpu.memory_space<vmem>>, %arg2: memref<1x9xf32, #tpu.memory_space<vmem>>, %arg3: memref<1x1xf32, #tpu.memory_space<vmem>>, %arg4: memref<1x128xf32, #tpu.memory_space<vmem>>) attributes {dimension_semantics = [#tpu.dimension_semantics<parallel>], iteration_bounds = array<i64: 1>, scalar_prefetch = 0 : i64, scratch_operands = 0 : i64, tpu.core_type = #tpu.core_type<tc>, window_params = [{transform_indices = @transform_0, window_bounds = array<i64: 9, 128>}, {pipeline_mode = #tpu.pipeline_mode<synchronous>, transform_indices = @transform_1, window_bounds = array<i64: 1, 9>}, {pipeline_mode = #tpu.pipeline_mode<synchronous>, transform_indices = @transform_2, window_bounds = array<i64: 1, 1>}, {transform_indices = @transform_3, window_bounds = array<i64: 1, 128>}]} {
    %c0 = arith.constant 0 : index
    %c0_0 = arith.constant 0 : index
    %0 = vector.load %arg2[%c0, %c0_0] : memref<1x9xf32, #tpu.memory_space<vmem>>, vector<1x9xf32>
    %c0_1 = arith.constant 0 : index
    %c0_2 = arith.constant 0 : index
    %1 = vector.load %arg1[%c0_1, %c0_2] : memref<9x128xf32, #tpu.memory_space<vmem>>, vector<9x128xf32>
    %cst = arith.constant dense<0.000000e+00> : vector<1x128xf32>
    %2 = tpu.matmul %0, %1, %cst {dimension_numbers = #tpu.dot_dimension_numbers<[1], [0], [0], [1], [0, 0, 1, 1], [], []>} : vector<1x9xf32>, vector<9x128xf32>, vector<1x128xf32> -> vector<1x128xf32>
    %c0_3 = arith.constant 0 : index
    %c0_4 = arith.constant 0 : index
    %3 = vector.load %arg3[%c0_3, %c0_4] : memref<1x1xf32, #tpu.memory_space<vmem>>, vector<1x1xf32>
    %4 = vector.broadcast %3 : vector<1x1xf32> to vector<1x128xf32>
    %5 = arith.addf %2, %4 : vector<1x128xf32>
    %cst_5 = arith.constant 0.000000e+00 : f32
    %6 = vector.broadcast %cst_5 : f32 to vector<1x128xf32>
    %7 = arith.maximumf %5, %6 : vector<1x128xf32>
    %c0_6 = arith.constant 0 : index
    %c0_7 = arith.constant 0 : index
    %8 = vector.load %arg4[%c0_6, %c0_7] : memref<1x128xf32, #tpu.memory_space<vmem>>, vector<1x128xf32>
    tpu.vector_store %arg4[%c0_6, %c0_7], %7 {strides = array<i32>} : memref<1x128xf32, #tpu.memory_space<vmem>>, vector<1x128xf32>,
    return
  }
  func.func @transform_0(%arg0: i32) -> (i32, i32) {
    %c0_i32 = arith.constant 0 : i32
    %c0_i32_0 = arith.constant 0 : i32
    return %c0_i32, %arg0 : i32, i32
  }
  func.func @transform_1(%arg0: i32) -> (i32, i32) {
    %c0_i32 = arith.constant 0 : i32
    %c0_i32_0 = arith.constant 0 : i32
    %c0_i32_1 = arith.constant 0 : i32
    return %c0_i32, %c0_i32_0 : i32, i32
  }
  func.func @transform_2(%arg0: i32) -> (i32, i32) {
    %c0_i32 = arith.constant 0 : i32
    %c0_i32_0 = arith.constant 0 : i32
    %c0_i32_1 = arith.constant 0 : i32
    return %c0_i32, %c0_i32_0 : i32, i32
  }
  func.func @transform_3(%arg0: i32) -> (i32, i32) {
    %c0_i32 = arith.constant 0 : i32
    %c0_i32_0 = arith.constant 0 : i32
    return %c0_i32, %arg0 : i32, i32
  }
}

module attributes {stable_mosaic.version = 11 : i64} {
  func.func @interp_add_kernel(%arg0: memref<2x2x2xf32, #tpu.memory_space<vmem>>, %arg1: memref<4x2xf32, #tpu.memory_space<vmem>>, %arg2: memref<2x4xf32, #tpu.memory_space<vmem>>, %arg3: memref<2x4x4xf32, #tpu.memory_space<vmem>>, %arg4: memref<2x4x4xf32, #tpu.memory_space<vmem>>) attributes {dimension_semantics = [], scalar_prefetch = 0 : i64, scratch_operands = 0 : i64, tpu.core_type = #tpu.core_type<tc>} {
    %c0 = arith.constant 0 : index
    %c0_0 = arith.constant 0 : index
    %0 = vector.load %arg1[%c0, %c0_0] : memref<4x2xf32, #tpu.memory_space<vmem>>, vector<4x2xf32>
    %c0_1 = arith.constant 0 : index
    %c0_2 = arith.constant 0 : index
    %c0_3 = arith.constant 0 : index
    %1 = vector.load %arg0[%c0_1, %c0_2, %c0_3] : memref<2x2x2xf32, #tpu.memory_space<vmem>>, vector<1x2x2xf32>
    %2 = vector.shape_cast %1 : vector<1x2x2xf32> to vector<2x2xf32>
    %cst = arith.constant dense<0.000000e+00> : vector<4x2xf32>
    %3 = tpu.matmul %0, %2, %cst {dimension_numbers = #tpu.dot_dimension_numbers<[1], [0], [0], [1], [0, 0, 1, 1], [], []>} : vector<4x2xf32>, vector<2x2xf32>, vector<4x2xf32> -> vector<4x2xf32>
    %c0_4 = arith.constant 0 : index
    %c0_5 = arith.constant 0 : index
    %4 = vector.load %arg2[%c0_4, %c0_5] : memref<2x4xf32, #tpu.memory_space<vmem>>, vector<2x4xf32>
    %cst_6 = arith.constant dense<0.000000e+00> : vector<4x4xf32>
    %5 = tpu.matmul %3, %4, %cst_6 {dimension_numbers = #tpu.dot_dimension_numbers<[1], [0], [0], [1], [0, 0, 1, 1], [], []>} : vector<4x2xf32>, vector<2x4xf32>, vector<4x4xf32> -> vector<4x4xf32>
    %c0_7 = arith.constant 0 : index
    %c0_8 = arith.constant 0 : index
    %c0_9 = arith.constant 0 : index
    %6 = vector.load %arg3[%c0_7, %c0_8, %c0_9] : memref<2x4x4xf32, #tpu.memory_space<vmem>>, vector<1x4x4xf32>
    %7 = vector.shape_cast %6 : vector<1x4x4xf32> to vector<4x4xf32>
    %8 = arith.addf %5, %7 : vector<4x4xf32>
    %c0_10 = arith.constant 0 : index
    %c0_11 = arith.constant 0 : index
    %c0_12 = arith.constant 0 : index
    %9 = vector.load %arg4[%c0_10, %c0_11, %c0_12] : memref<2x4x4xf32, #tpu.memory_space<vmem>>, vector<1x4x4xf32>
    %10 = vector.shape_cast %9 : vector<1x4x4xf32> to vector<4x4xf32>
    %11 = vector.shape_cast %8 : vector<4x4xf32> to vector<1x4x4xf32>
    tpu.vector_store %arg4[%c0_10, %c0_11, %c0_12], %11 {strides = array<i32>} : memref<2x4x4xf32, #tpu.memory_space<vmem>>, vector<1x4x4xf32>,
    %c0_13 = arith.constant 0 : index
    %c0_14 = arith.constant 0 : index
    %12 = vector.load %arg1[%c0_13, %c0_14] : memref<4x2xf32, #tpu.memory_space<vmem>>, vector<4x2xf32>
    %c1 = arith.constant 1 : index
    %c0_15 = arith.constant 0 : index
    %c0_16 = arith.constant 0 : index
    %13 = vector.load %arg0[%c1, %c0_15, %c0_16] : memref<2x2x2xf32, #tpu.memory_space<vmem>>, vector<1x2x2xf32>
    %14 = vector.shape_cast %13 : vector<1x2x2xf32> to vector<2x2xf32>
    %cst_17 = arith.constant dense<0.000000e+00> : vector<4x2xf32>
    %15 = tpu.matmul %12, %14, %cst_17 {dimension_numbers = #tpu.dot_dimension_numbers<[1], [0], [0], [1], [0, 0, 1, 1], [], []>} : vector<4x2xf32>, vector<2x2xf32>, vector<4x2xf32> -> vector<4x2xf32>
    %c0_18 = arith.constant 0 : index
    %c0_19 = arith.constant 0 : index
    %16 = vector.load %arg2[%c0_18, %c0_19] : memref<2x4xf32, #tpu.memory_space<vmem>>, vector<2x4xf32>
    %cst_20 = arith.constant dense<0.000000e+00> : vector<4x4xf32>
    %17 = tpu.matmul %15, %16, %cst_20 {dimension_numbers = #tpu.dot_dimension_numbers<[1], [0], [0], [1], [0, 0, 1, 1], [], []>} : vector<4x2xf32>, vector<2x4xf32>, vector<4x4xf32> -> vector<4x4xf32>
    %c1_21 = arith.constant 1 : index
    %c0_22 = arith.constant 0 : index
    %c0_23 = arith.constant 0 : index
    %18 = vector.load %arg3[%c1_21, %c0_22, %c0_23] : memref<2x4x4xf32, #tpu.memory_space<vmem>>, vector<1x4x4xf32>
    %19 = vector.shape_cast %18 : vector<1x4x4xf32> to vector<4x4xf32>
    %20 = arith.addf %17, %19 : vector<4x4xf32>
    %c1_24 = arith.constant 1 : index
    %c0_25 = arith.constant 0 : index
    %c0_26 = arith.constant 0 : index
    %21 = vector.load %arg4[%c1_24, %c0_25, %c0_26] : memref<2x4x4xf32, #tpu.memory_space<vmem>>, vector<1x4x4xf32>
    %22 = vector.shape_cast %21 : vector<1x4x4xf32> to vector<4x4xf32>
    %23 = vector.shape_cast %20 : vector<4x4xf32> to vector<1x4x4xf32>
    tpu.vector_store %arg4[%c1_24, %c0_25, %c0_26], %23 {strides = array<i32>} : memref<2x4x4xf32, #tpu.memory_space<vmem>>, vector<1x4x4xf32>,
    return
  }
}

module attributes {stable_mosaic.version = 11 : i64} {
  func.func @conv_mm_kernel(%arg0: i32, %arg1: i32, %arg2: memref<1x4x256xf32, #tpu.memory_space<vmem>>, %arg3: memref<4x4xf32, #tpu.memory_space<vmem>>, %arg4: memref<4x1xf32, #tpu.memory_space<vmem>>, %arg5: memref<1x4x256xf32, #tpu.memory_space<vmem>>) attributes {dimension_semantics = [#tpu.dimension_semantics<parallel>, #tpu.dimension_semantics<parallel>], iteration_bounds = array<i64: 2, 1>, scalar_prefetch = 0 : i64, scratch_operands = 0 : i64, tpu.core_type = #tpu.core_type<tc>, window_params = [{transform_indices = @transform_0, window_bounds = array<i64: 1, 4, 256>}, {pipeline_mode = #tpu.pipeline_mode<synchronous>, transform_indices = @transform_1, window_bounds = array<i64: 4, 4>}, {pipeline_mode = #tpu.pipeline_mode<synchronous>, transform_indices = @transform_2, window_bounds = array<i64: 4, 1>}, {transform_indices = @transform_3, window_bounds = array<i64: 1, 4, 256>}]} {
    %c0 = arith.constant 0 : index
    %c0_0 = arith.constant 0 : index
    %0 = vector.load %arg3[%c0, %c0_0] : memref<4x4xf32, #tpu.memory_space<vmem>>, vector<4x4xf32>
    %c0_1 = arith.constant 0 : index
    %c0_2 = arith.constant 0 : index
    %c0_3 = arith.constant 0 : index
    %1 = vector.load %arg2[%c0_1, %c0_2, %c0_3] : memref<1x4x256xf32, #tpu.memory_space<vmem>>, vector<1x4x256xf32>
    %2 = vector.shape_cast %1 : vector<1x4x256xf32> to vector<4x256xf32>
    %cst = arith.constant dense<0.000000e+00> : vector<4x256xf32>
    %3 = tpu.matmul %0, %2, %cst {dimension_numbers = #tpu.dot_dimension_numbers<[1], [0], [0], [1], [0, 0, 1, 1], [], []>} : vector<4x4xf32>, vector<4x256xf32>, vector<4x256xf32> -> vector<4x256xf32>
    %c0_4 = arith.constant 0 : index
    %c0_5 = arith.constant 0 : index
    %4 = vector.load %arg4[%c0_4, %c0_5] : memref<4x1xf32, #tpu.memory_space<vmem>>, vector<4x1xf32>
    %5 = vector.broadcast %4 : vector<4x1xf32> to vector<4x256xf32>
    %6 = arith.addf %3, %5 : vector<4x256xf32>
    %cst_6 = arith.constant 0.000000e+00 : f32
    %7 = vector.broadcast %cst_6 : f32 to vector<4x256xf32>
    %8 = arith.maximumf %6, %7 : vector<4x256xf32>
    %c0_7 = arith.constant 0 : index
    %c0_8 = arith.constant 0 : index
    %c0_9 = arith.constant 0 : index
    %9 = vector.load %arg5[%c0_7, %c0_8, %c0_9] : memref<1x4x256xf32, #tpu.memory_space<vmem>>, vector<1x4x256xf32>
    %10 = vector.shape_cast %9 : vector<1x4x256xf32> to vector<4x256xf32>
    %11 = vector.shape_cast %8 : vector<4x256xf32> to vector<1x4x256xf32>
    tpu.vector_store %arg5[%c0_7, %c0_8, %c0_9], %11 {strides = array<i32>} : memref<1x4x256xf32, #tpu.memory_space<vmem>>, vector<1x4x256xf32>,
    return
  }
  func.func @transform_0(%arg0: i32, %arg1: i32) -> (i32, i32, i32) {
    %c0_i32 = arith.constant 0 : i32
    %c0_i32_0 = arith.constant 0 : i32
    return %arg0, %c0_i32, %arg1 : i32, i32, i32
  }
  func.func @transform_1(%arg0: i32, %arg1: i32) -> (i32, i32) {
    %c0_i32 = arith.constant 0 : i32
    %c0_i32_0 = arith.constant 0 : i32
    %c0_i32_1 = arith.constant 0 : i32
    return %c0_i32, %c0_i32_0 : i32, i32
  }
  func.func @transform_2(%arg0: i32, %arg1: i32) -> (i32, i32) {
    %c0_i32 = arith.constant 0 : i32
    %c0_i32_0 = arith.constant 0 : i32
    %c0_i32_1 = arith.constant 0 : i32
    return %c0_i32, %c0_i32_0 : i32, i32
  }
  func.func @transform_3(%arg0: i32, %arg1: i32) -> (i32, i32, i32) {
    %c0_i32 = arith.constant 0 : i32
    %c0_i32_0 = arith.constant 0 : i32
    return %arg0, %c0_i32, %arg1 : i32, i32, i32
  }
}

module attributes {stable_mosaic.version = 11 : i64} {
  func.func @up2_fuse_kernel(%arg0: i32, %arg1: i32, %arg2: memref<1x4x4xf32, #tpu.memory_space<vmem>>, %arg3: memref<1x8x8xf32, #tpu.memory_space<vmem>>, %arg4: memref<8x4xf32, #tpu.memory_space<vmem>>, %arg5: memref<4x8xf32, #tpu.memory_space<vmem>>, %arg6: memref<16x8xf32, #tpu.memory_space<vmem>>, %arg7: memref<8x16xf32, #tpu.memory_space<vmem>>, %arg8: memref<1x4x16x16xf32, #tpu.memory_space<vmem>>, %arg9: memref<1x4x16x16xf32, #tpu.memory_space<vmem>>, %arg10: memref<1x4x16x16xf32, #tpu.memory_space<vmem>>) attributes {dimension_semantics = [#tpu.dimension_semantics<parallel>, #tpu.dimension_semantics<parallel>], iteration_bounds = array<i64: 2, 1>, scalar_prefetch = 0 : i64, scratch_operands = 0 : i64, tpu.core_type = #tpu.core_type<tc>, window_params = [{transform_indices = @transform_0, window_bounds = array<i64: 1, 4, 4>}, {transform_indices = @transform_1, window_bounds = array<i64: 1, 8, 8>}, {pipeline_mode = #tpu.pipeline_mode<synchronous>, transform_indices = @transform_2, window_bounds = array<i64: 8, 4>}, {pipeline_mode = #tpu.pipeline_mode<synchronous>, transform_indices = @transform_3, window_bounds = array<i64: 4, 8>}, {pipeline_mode = #tpu.pipeline_mode<synchronous>, transform_indices = @transform_4, window_bounds = array<i64: 16, 8>}, {pipeline_mode = #tpu.pipeline_mode<synchronous>, transform_indices = @transform_5, window_bounds = array<i64: 8, 16>}, {transform_indices = @transform_6, window_bounds = array<i64: 1, 4, 16, 16>}, {transform_indices = @transform_7, window_bounds = array<i64: 1, 4, 16, 16>}, {transform_indices = @transform_8, window_bounds = array<i64: 1, 4, 16, 16>}]} {
    %c0 = arith.constant 0 : index
    %c0_0 = arith.constant 0 : index
    %0 = vector.load %arg4[%c0, %c0_0] : memref<8x4xf32, #tpu.memory_space<vmem>>, vector<8x4xf32>
    %c0_1 = arith.constant 0 : index
    %c0_2 = arith.constant 0 : index
    %c0_3 = arith.constant 0 : index
    %1 = vector.load %arg2[%c0_1, %c0_2, %c0_3] : memref<1x4x4xf32, #tpu.memory_space<vmem>>, vector<1x4x4xf32>
    %2 = vector.shape_cast %1 : vector<1x4x4xf32> to vector<4x4xf32>
    %cst = arith.constant dense<0.000000e+00> : vector<8x4xf32>
    %3 = tpu.matmul %0, %2, %cst {dimension_numbers = #tpu.dot_dimension_numbers<[1], [0], [0], [1], [0, 0, 1, 1], [], []>} : vector<8x4xf32>, vector<4x4xf32>, vector<8x4xf32> -> vector<8x4xf32>
    %c0_4 = arith.constant 0 : index
    %c0_5 = arith.constant 0 : index
    %4 = vector.load %arg5[%c0_4, %c0_5] : memref<4x8xf32, #tpu.memory_space<vmem>>, vector<4x8xf32>
    %cst_6 = arith.constant dense<0.000000e+00> : vector<8x8xf32>
    %5 = tpu.matmul %3, %4, %cst_6 {dimension_numbers = #tpu.dot_dimension_numbers<[1], [0], [0], [1], [0, 0, 1, 1], [], []>} : vector<8x4xf32>, vector<4x8xf32>, vector<8x8xf32> -> vector<8x8xf32>
    %c0_7 = arith.constant 0 : index
    %c0_8 = arith.constant 0 : index
    %c0_9 = arith.constant 0 : index
    %6 = vector.load %arg3[%c0_7, %c0_8, %c0_9] : memref<1x8x8xf32, #tpu.memory_space<vmem>>, vector<1x8x8xf32>
    %7 = vector.shape_cast %6 : vector<1x8x8xf32> to vector<8x8xf32>
    %8 = arith.addf %5, %7 : vector<8x8xf32>
    %c0_10 = arith.constant 0 : index
    %c0_11 = arith.constant 0 : index
    %9 = vector.load %arg6[%c0_10, %c0_11] : memref<16x8xf32, #tpu.memory_space<vmem>>, vector<16x8xf32>
    %cst_12 = arith.constant dense<0.000000e+00> : vector<16x8xf32>
    %10 = tpu.matmul %9, %8, %cst_12 {dimension_numbers = #tpu.dot_dimension_numbers<[1], [0], [0], [1], [0, 0, 1, 1], [], []>} : vector<16x8xf32>, vector<8x8xf32>, vector<16x8xf32> -> vector<16x8xf32>
    %c0_13 = arith.constant 0 : index
    %c0_14 = arith.constant 0 : index
    %11 = vector.load %arg7[%c0_13, %c0_14] : memref<8x16xf32, #tpu.memory_space<vmem>>, vector<8x16xf32>
    %cst_15 = arith.constant dense<0.000000e+00> : vector<16x16xf32>
    %12 = tpu.matmul %10, %11, %cst_15 {dimension_numbers = #tpu.dot_dimension_numbers<[1], [0], [0], [1], [0, 0, 1, 1], [], []>} : vector<16x8xf32>, vector<8x16xf32>, vector<16x16xf32> -> vector<16x16xf32>
    %13 = vector.shape_cast %12 : vector<16x16xf32> to vector<1x16x16xf32>
    %c0_16 = arith.constant 0 : index
    %c0_17 = arith.constant 0 : index
    %c0_18 = arith.constant 0 : index
    %c0_19 = arith.constant 0 : index
    %14 = vector.load %arg8[%c0_16, %c0_17, %c0_18, %c0_19] : memref<1x4x16x16xf32, #tpu.memory_space<vmem>>, vector<1x4x16x16xf32>
    %15 = vector.shape_cast %14 : vector<1x4x16x16xf32> to vector<4x16x16xf32>
    %16 = vector.broadcast %13 : vector<1x16x16xf32> to vector<4x16x16xf32>
    %17 = arith.mulf %16, %15 : vector<4x16x16xf32>
    %c0_20 = arith.constant 0 : index
    %c0_21 = arith.constant 0 : index
    %c0_22 = arith.constant 0 : index
    %c0_23 = arith.constant 0 : index
    %18 = vector.load %arg9[%c0_20, %c0_21, %c0_22, %c0_23] : memref<1x4x16x16xf32, #tpu.memory_space<vmem>>, vector<1x4x16x16xf32>
    %19 = vector.shape_cast %18 : vector<1x4x16x16xf32> to vector<4x16x16xf32>
    %20 = arith.addf %17, %19 : vector<4x16x16xf32>
    %c0_24 = arith.constant 0 : index
    %c0_25 = arith.constant 0 : index
    %c0_26 = arith.constant 0 : index
    %c0_27 = arith.constant 0 : index
    %21 = vector.load %arg10[%c0_24, %c0_25, %c0_26, %c0_27] : memref<1x4x16x16xf32, #tpu.memory_space<vmem>>, vector<1x4x16x16xf32>
    %22 = vector.shape_cast %21 : vector<1x4x16x16xf32> to vector<4x16x16xf32>
    %23 = vector.shape_cast %20 : vector<4x16x16xf32> to vector<1x4x16x16xf32>
    tpu.vector_store %arg10[%c0_24, %c0_25, %c0_26, %c0_27], %23 {strides = array<i32>} : memref<1x4x16x16xf32, #tpu.memory_space<vmem>>, vector<1x4x16x16xf32>,
    return
  }
  func.func @transform_0(%arg0: i32, %arg1: i32) -> (i32, i32, i32) {
    %c0_i32 = arith.constant 0 : i32
    %c0_i32_0 = arith.constant 0 : i32
    %c0_i32_1 = arith.constant 0 : i32
    return %arg0, %c0_i32, %c0_i32_0 : i32, i32, i32
  }
  func.func @transform_1(%arg0: i32, %arg1: i32) -> (i32, i32, i32) {
    %c0_i32 = arith.constant 0 : i32
    %c0_i32_0 = arith.constant 0 : i32
    %c0_i32_1 = arith.constant 0 : i32
    return %arg0, %c0_i32, %c0_i32_0 : i32, i32, i32
  }
  func.func @transform_2(%arg0: i32, %arg1: i32) -> (i32, i32) {
    %c0_i32 = arith.constant 0 : i32
    %c0_i32_0 = arith.constant 0 : i32
    %c0_i32_1 = arith.constant 0 : i32
    return %c0_i32, %c0_i32_0 : i32, i32
  }
  func.func @transform_3(%arg0: i32, %arg1: i32) -> (i32, i32) {
    %c0_i32 = arith.constant 0 : i32
    %c0_i32_0 = arith.constant 0 : i32
    %c0_i32_1 = arith.constant 0 : i32
    return %c0_i32, %c0_i32_0 : i32, i32
  }
  func.func @transform_4(%arg0: i32, %arg1: i32) -> (i32, i32) {
    %c0_i32 = arith.constant 0 : i32
    %c0_i32_0 = arith.constant 0 : i32
    %c0_i32_1 = arith.constant 0 : i32
    return %c0_i32, %c0_i32_0 : i32, i32
  }
  func.func @transform_5(%arg0: i32, %arg1: i32) -> (i32, i32) {
    %c0_i32 = arith.constant 0 : i32
    %c0_i32_0 = arith.constant 0 : i32
    %c0_i32_1 = arith.constant 0 : i32
    return %c0_i32, %c0_i32_0 : i32, i32
  }
  func.func @transform_6(%arg0: i32, %arg1: i32) -> (i32, i32, i32, i32) {
    %c0_i32 = arith.constant 0 : i32
    %c0_i32_0 = arith.constant 0 : i32
    %c0_i32_1 = arith.constant 0 : i32
    return %arg0, %arg1, %c0_i32, %c0_i32_0 : i32, i32, i32, i32
  }
  func.func @transform_7(%arg0: i32, %arg1: i32) -> (i32, i32, i32, i32) {
    %c0_i32 = arith.constant 0 : i32
    %c0_i32_0 = arith.constant 0 : i32
    %c0_i32_1 = arith.constant 0 : i32
    return %arg0, %arg1, %c0_i32, %c0_i32_0 : i32, i32, i32, i32
  }
  func.func @transform_8(%arg0: i32, %arg1: i32) -> (i32, i32, i32, i32) {
    %c0_i32 = arith.constant 0 : i32
    %c0_i32_0 = arith.constant 0 : i32
    %c0_i32_1 = arith.constant 0 : i32
    return %arg0, %arg1, %c0_i32, %c0_i32_0 : i32, i32, i32, i32
  }
}

</mosaic_0001>

<llo_original>
// kernel: _lambda_.10
$region0: #{_lambda_.10}
  #allocation0 [shape = 'u32[]', space=smem, size = 0x4, offset = 0x4, fixed_abs, tag = 'smem constant byte address 0x4 - core index']
  #allocation1 [shape = 'u32[144,128]{1,0:T(1,128)}', space=vmem, size = 0x12000, scoped, tag = 'internal scratch']
  #allocation2 [shape = 'f32[1,1]{1,0:T(1,128)S(1)}', space=vmem, size = 0x200, scoped, tag = 'scoped memory for _lambda_.10']
  %s0 = inlined_call_operand.vmem [shape: f32[196,128], index: 0, kind: input, shape index: {}]
  %s1 = inlined_call_operand.vmem [shape: f32[1,196], index: 1, kind: input, shape index: {}]
  %s2 = inlined_call_operand.<no memory space> [shape: f32[1,1], index: 2, kind: input, shape index: {}]
  %s3 = inlined_call_operand.vmem [shape: f32[1,128], index: 3, kind: output, shape index: {}]
  %s4 = sld [smem:[#allocation0]]
  $region22: #{_lambda_.10} parent=0
    _
  %s6 = ssub.s32 1, %s4
  %s7 = scalar_select 0, %s6, %s4
  %v8 = vstv %s2
  %9 = vst [vmem:[#allocation2] sm:$0x1] %v8
  // Predicated region
  $region2: #{_lambda_.10} parent=0 // pred_check
    _
  $region3: #{_lambda_.10} parent=0 // pred_check_branch
    %11 = sbr.rel (0) target = $region5
  $region4: #{_lambda_.10} parent=0 // pred_region
    _
  $region5: #{_lambda_.10} parent=0 // pred_fallthru
    _
  // Predicated region
  $region6: #{_lambda_.10} parent=0 // pred_check
    _
  $region7: #{_lambda_.10} parent=0 // pred_check_branch
    %13 = sbr.rel (0) target = $region9
  $region8: #{_lambda_.10} parent=0 // pred_region
    _
  $region9: #{_lambda_.10} parent=0 // pred_fallthru
    _
  // Predicated region
  $region10: #{_lambda_.10} parent=0 // pred_check
    _
  $region11: #{_lambda_.10} parent=0 // pred_check_branch
    %15 = sbr.rel (0) target = $region13
  $region12: #{_lambda_.10} parent=0 // pred_region
    _
  $region13: #{_lambda_.10} parent=0 // pred_fallthru
    _
  %v16 = vld [vmem:[%s1] sm:$0x3]
  %v17 = vld [vmem:[%s0] sm:$0xff]
  %v18 = vld [vmem:[%s0 + $0x8] sm:$0xff]
  %v19 = vld [vmem:[%s0 + $0x10] sm:$0xff]
  %v20 = vld [vmem:[%s0 + $0x18] sm:$0xff]
  %v21 = vld [vmem:[%s0 + $0x20] sm:$0xff]
  %v22 = vld [vmem:[%s0 + $0x28] sm:$0xff]
  %v23 = vld [vmem:[%s0 + $0x30] sm:$0xff]
  %v24 = vld [vmem:[%s0 + $0x38] sm:$0xff]
  %v25 = vld [vmem:[%s0 + $0x40] sm:$0xff]
  %v26 = vld [vmem:[%s0 + $0x48] sm:$0xff]
  %v27 = vld [vmem:[%s0 + $0x50] sm:$0xff]
  %v28 = vld [vmem:[%s0 + $0x58] sm:$0xff]
  %v29 = vld [vmem:[%s0 + $0x60] sm:$0xff]
  %v30 = vld [vmem:[%s0 + $0x68] sm:$0xff]
  %v31 = vld [vmem:[%s0 + $0x70] sm:$0xff]
  %v32 = vld [vmem:[%s0 + $0x78] sm:$0xff]
  %v33 = vld [vmem:[%s0 + $0x80] sm:$0xff]
  %v34 = vld [vmem:[%s0 + $0x88] sm:$0xff]
  %v35 = vld [vmem:[%s0 + $0x90] sm:$0xff]
  %v36 = vld [vmem:[%s0 + $0x98] sm:$0xff]
  %v37 = vld [vmem:[%s0 + $0xa0] sm:$0xff]
  %v38 = vld [vmem:[%s0 + $0xa8] sm:$0xff]
  %v39 = vld [vmem:[%s0 + $0xb0] sm:$0xff]
  %v40 = vld [vmem:[%s0 + $0xb8] sm:$0xff]
  %v41 = vld [vmem:[%s0 + $0xc0] sm:$0xf]
  %v42 = vld [vmem:[#allocation2] sm:$0x1]
  %44 = vset.pattern.permute.xlu0 0
  %45 = vperm.xlu0 %44, %v42
  %v46 = vpop.permute.xlu0 %45
  %v48 = vlaneseq
  %v49 = vshrl.u32 %v48, 7
  %v50 = vsub.s32 0, %v49
  %v51 = vrot.slane %v46, %v50
  %v53 = vlaneseq
  %v54 = vshrl.u32 %v53, 7
  %v55 = vsub.s32 0, %v54
  %v56 = vrot.slane %v16, %v55
  %v57 = vlaneseq
  %v58 = vshrl.u32 %v57, 7
  %v59 = vsub.s32 1, %v58
  %v60 = vrot.slane %v16, %v59
  %vm62 = vcmask 556032
  %v63 = vsel %vm62, %v60, 0
  %vm65 = vcmask 1043456
  %v67 = vsel %vm65, %v41, 0
  %69 = vmatprep.subr.mxu0 0.0
  %70 = vmatpush1.msra.mxu0 %v17
  %71 = vmatprep.subr.mxu0 0.0
  %72 = vmatpush1.msra.mxu0 %v18
  %73 = vmatprep.subr.mxu0 0.0
  %74 = vmatpush1.msra.mxu0 %v19
  %75 = vmatprep.subr.mxu0 0.0
  %76 = vmatpush1.msra.mxu0 %v20
  %77 = vmatprep.subr.mxu0 0.0
  %78 = vmatpush1.msra.mxu0 %v21
  %79 = vmatprep.subr.mxu0 0.0
  %80 = vmatpush1.msra.mxu0 %v22
  %81 = vmatprep.subr.mxu0 0.0
  %82 = vmatpush1.msra.mxu0 %v23
  %83 = vmatprep.subr.mxu0 0.0
  %84 = vmatpush1.msra.mxu0 %v24
  %85 = vmatprep.subr.mxu0 0.0
  %86 = vmatpush1.msra.mxu0 %v25
  %87 = vmatprep.subr.mxu0 0.0
  %88 = vmatpush1.msra.mxu0 %v26
  %89 = vmatprep.subr.mxu0 0.0
  %90 = vmatpush1.msra.mxu0 %v27
  %91 = vmatprep.subr.mxu0 0.0
  %92 = vmatpush1.msra.mxu0 %v28
  %93 = vmatprep.subr.mxu0 0.0
  %94 = vmatpush1.msra.mxu0 %v29
  %95 = vmatprep.subr.mxu0 0.0
  %96 = vmatpush1.msra.mxu0 %v30
  %97 = vmatprep.subr.mxu0 0.0
  %98 = vmatpush1.msra.mxu0 %v31
  %99 = vmatprep.subr.mxu0 0.0
  %100 = vmatpush1.msra.mxu0 %v32
  %101 = vmatprep.subr.mxu0 0.0
  %102 = vmatpush1.msra.mxu0 %v33
  %103 = vmatprep.subr.mxu0 0.0
  %104 = vmatpush1.msra.mxu0 %v34
  %105 = vmatprep.subr.mxu0 0.0
  %106 = vmatpush1.msra.mxu0 %v35
  %107 = vmatprep.subr.mxu0 0.0
  %108 = vmatpush1.msra.mxu0 %v36
  %109 = vmatprep.subr.mxu0 0.0
  %110 = vmatpush1.msra.mxu0 %v37
  %111 = vmatprep.subr.mxu0 0.0
  %112 = vmatpush1.msra.mxu0 %v38
  %113 = vmatprep.subr.mxu0 0.0
  %114 = vmatpush1.msra.mxu0 %v39
  %115 = vmatprep.subr.mxu0 0.0
  %116 = vmatpush1.msra.mxu0 %v40
  %117 = vmatprep.subr.mxu0 0.0
  %118 = vmatpush1.msra.mxu0 %v67
  %119 = vmatprep.subr.mxu0 0.0
  %120 = vmatpush1.msra.mxu0 0.0
  %121 = vmatprep.subr.mxu0 0.0
  %122 = vmatpush1.msra.mxu0 0.0
  %123 = vmatprep.subr.mxu0 0.0
  %124 = vmatpush1.msra.mxu0 0.0
  %125 = vmatprep.subr.mxu0 0.0
  %126 = vmatpush1.msra.mxu0 0.0
  %127 = vmatprep.subr.mxu0 0.0
  %128 = vmatpush1.msra.mxu0 0.0
  %129 = vmatprep.subr.mxu0 0.0
  %130 = vmatpush1.msra.mxu0 0.0
  %131 = vmatprep.subr.mxu0 0.0
  %132 = vmatpush1.msra.mxu0 0.0
  %133 = vmatprep.mubr.f32.mxu0 %v63
  %134 = vmatmul.mubr.f32.gmra.mrb[0].mxu0 %v56
  %v135 = vpop.f32.mrb[0].mxu0
  %v136 = vadd.f32 %v51, %v135
  %v137 = vpop.f32.mrb[0].mxu0
  %138 = vdwg.mxu0
  %v139 = vmax.f32 %v136, 0.0
  %140 = vst [vmem:[%s3] sm:$0x1] %v139
  // Predicated region
  $region14: #{_lambda_.10} parent=0 // pred_check
    _
  $region15: #{_lambda_.10} parent=0 // pred_check_branch
    %142 = sbr.rel (0) target = $region17
  $region16: #{_lambda_.10} parent=0 // pred_region
    _
  $region17: #{_lambda_.10} parent=0 // pred_fallthru
    _
  // Predicated region
  $region18: #{_lambda_.10} parent=0 // pred_check
    _
  $region19: #{_lambda_.10} parent=0 // pred_check_branch
    %144 = sbr.rel (0) target = $region21
  $region20: #{_lambda_.10} parent=0 // pred_region
    _
  $region21: #{_lambda_.10} parent=0 // pred_fallthru
    _

// kernel: _lambda_.16
$region0: #{_lambda_.16}
  #allocation0 [shape = 'u32[]', space=smem, size = 0x4, offset = 0x4, fixed_abs, tag = 'smem constant byte address 0x4 - core index']
  #allocation1 [shape = 'u32[144,128]{1,0:T(1,128)}', space=vmem, size = 0x12000, scoped, tag = 'internal scratch']
  #allocation2 [shape = 'f32[1,1]{1,0:T(1,128)S(1)}', space=vmem, size = 0x200, scoped, tag = 'scoped memory for _lambda_.16']
  %s0 = inlined_call_operand.vmem [shape: f32[49,128], index: 0, kind: input, shape index: {}]
  %s1 = inlined_call_operand.vmem [shape: f32[1,49], index: 1, kind: input, shape index: {}]
  %s2 = inlined_call_operand.<no memory space> [shape: f32[1,1], index: 2, kind: input, shape index: {}]
  %s3 = inlined_call_operand.vmem [shape: f32[1,128], index: 3, kind: output, shape index: {}]
  %s4 = sld [smem:[#allocation0]]
  $region22: #{_lambda_.16} parent=0
    _
  %s6 = ssub.s32 1, %s4
  %s7 = scalar_select 0, %s6, %s4
  %v8 = vstv %s2
  %9 = vst [vmem:[#allocation2] sm:$0x1] %v8
  // Predicated region
  $region2: #{_lambda_.16} parent=0 // pred_check
    _
  $region3: #{_lambda_.16} parent=0 // pred_check_branch
    %11 = sbr.rel (0) target = $region5
  $region4: #{_lambda_.16} parent=0 // pred_region
    _
  $region5: #{_lambda_.16} parent=0 // pred_fallthru
    _
  // Predicated region
  $region6: #{_lambda_.16} parent=0 // pred_check
    _
  $region7: #{_lambda_.16} parent=0 // pred_check_branch
    %13 = sbr.rel (0) target = $region9
  $region8: #{_lambda_.16} parent=0 // pred_region
    _
  $region9: #{_lambda_.16} parent=0 // pred_fallthru
    _
  // Predicated region
  $region10: #{_lambda_.16} parent=0 // pred_check
    _
  $region11: #{_lambda_.16} parent=0 // pred_check_branch
    %15 = sbr.rel (0) target = $region13
  $region12: #{_lambda_.16} parent=0 // pred_region
    _
  $region13: #{_lambda_.16} parent=0 // pred_fallthru
    _
  %v16 = vld [vmem:[%s1] sm:$0x1]
  %v17 = vld [vmem:[%s0] sm:$0xff]
  %v18 = vld [vmem:[%s0 + $0x8] sm:$0xff]
  %v19 = vld [vmem:[%s0 + $0x10] sm:$0xff]
  %v20 = vld [vmem:[%s0 + $0x18] sm:$0xff]
  %v21 = vld [vmem:[%s0 + $0x20] sm:$0xff]
  %v22 = vld [vmem:[%s0 + $0x28] sm:$0xff]
  %v23 = vld [vmem:[%s0 + $0x30] sm:$0x1]
  %v24 = vld [vmem:[#allocation2] sm:$0x1]
  %26 = vset.pattern.permute.xlu0 0
  %27 = vperm.xlu0 %26, %v24
  %v28 = vpop.permute.xlu0 %27
  %v30 = vlaneseq
  %v31 = vshrl.u32 %v30, 7
  %v32 = vsub.s32 0, %v31
  %v33 = vrot.slane %v28, %v32
  %vm34 = vcmask 400384
  %v36 = vsel %vm34, %v16, 0
  %vm38 = vcmask 1040384
  %v40 = vsel %vm38, %v23, 0
  %42 = vmatprep.subr.mxu0 0.0
  %43 = vmatpush1.msra.mxu0 %v17
  %44 = vmatprep.subr.mxu0 0.0
  %45 = vmatpush1.msra.mxu0 %v18
  %46 = vmatprep.subr.mxu0 0.0
  %47 = vmatpush1.msra.mxu0 %v19
  %48 = vmatprep.subr.mxu0 0.0
  %49 = vmatpush1.msra.mxu0 %v20
  %50 = vmatprep.subr.mxu0 0.0
  %51 = vmatpush1.msra.mxu0 %v21
  %52 = vmatprep.subr.mxu0 0.0
  %53 = vmatpush1.msra.mxu0 %v22
  %54 = vmatprep.subr.mxu0 0.0
  %55 = vmatpush1.msra.mxu0 %v40
  %56 = vmatprep.subr.mxu0 0.0
  %57 = vmatpush1.msra.mxu0 0.0
  %58 = vmatprep.subr.mxu0 0.0
  %59 = vmatpush1.msra.mxu0 0.0
  %60 = vmatprep.subr.mxu0 0.0
  %61 = vmatpush1.msra.mxu0 0.0
  %62 = vmatprep.subr.mxu0 0.0
  %63 = vmatpush1.msra.mxu0 0.0
  %64 = vmatprep.subr.mxu0 0.0
  %65 = vmatpush1.msra.mxu0 0.0
  %66 = vmatprep.subr.mxu0 0.0
  %67 = vmatpush1.msra.mxu0 0.0
  %68 = vmatprep.subr.mxu0 0.0
  %69 = vmatpush1.msra.mxu0 0.0
  %70 = vmatprep.subr.mxu0 0.0
  %71 = vmatpush1.msra.mxu0 0.0
  %72 = vmatprep.subr.mxu0 0.0
  %73 = vmatpush1.msra.mxu0 0.0
  %74 = vmatprep.subr.mxu0 0.0
  %75 = vmatpush1.msra.mxu0 0.0
  %76 = vmatprep.subr.mxu0 0.0
  %77 = vmatpush1.msra.mxu0 0.0
  %78 = vmatprep.subr.mxu0 0.0
  %79 = vmatpush1.msra.mxu0 0.0
  %80 = vmatprep.subr.mxu0 0.0
  %81 = vmatpush1.msra.mxu0 0.0
  %82 = vmatprep.subr.mxu0 0.0
  %83 = vmatpush1.msra.mxu0 0.0
  %84 = vmatprep.subr.mxu0 0.0
  %85 = vmatpush1.msra.mxu0 0.0
  %86 = vmatprep.subr.mxu0 0.0
  %87 = vmatpush1.msra.mxu0 0.0
  %88 = vmatprep.subr.mxu0 0.0
  %89 = vmatpush1.msra.mxu0 0.0
  %90 = vmatprep.subr.mxu0 0.0
  %91 = vmatpush1.msra.mxu0 0.0
  %92 = vmatprep.subr.mxu0 0.0
  %93 = vmatpush1.msra.mxu0 0.0
  %94 = vmatprep.subr.mxu0 0.0
  %95 = vmatpush1.msra.mxu0 0.0
  %96 = vmatprep.subr.mxu0 0.0
  %97 = vmatpush1.msra.mxu0 0.0
  %98 = vmatprep.subr.mxu0 0.0
  %99 = vmatpush1.msra.mxu0 0.0
  %100 = vmatprep.subr.mxu0 0.0
  %101 = vmatpush1.msra.mxu0 0.0
  %102 = vmatprep.subr.mxu0 0.0
  %103 = vmatpush1.msra.mxu0 0.0
  %104 = vmatprep.subr.mxu0 0.0
  %105 = vmatpush1.msra.mxu0 0.0
  %106 = vmatprep.mubr.f32.mxu0 0.0
  %107 = vmatmul.mubr.f32.gmra.mrb[0].mxu0 %v36
  %v108 = vpop.f32.mrb[0].mxu0
  %v109 = vadd.f32 %v33, %v108
  %v110 = vpop.f32.mrb[0].mxu0
  %111 = vdwg.mxu0
  %v112 = vmax.f32 %v109, 0.0
  %113 = vst [vmem:[%s3] sm:$0x1] %v112
  // Predicated region
  $region14: #{_lambda_.16} parent=0 // pred_check
    _
  $region15: #{_lambda_.16} parent=0 // pred_check_branch
    %115 = sbr.rel (0) target = $region17
  $region16: #{_lambda_.16} parent=0 // pred_region
    _
  $region17: #{_lambda_.16} parent=0 // pred_fallthru
    _
  // Predicated region
  $region18: #{_lambda_.16} parent=0 // pred_check
    _
  $region19: #{_lambda_.16} parent=0 // pred_check_branch
    %117 = sbr.rel (0) target = $region21
  $region20: #{_lambda_.16} parent=0 // pred_region
    _
  $region21: #{_lambda_.16} parent=0 // pred_fallthru
    _

// kernel: _lambda_.11
$region0: #{_lambda_.11}
  #allocation0 [shape = 'u32[]', space=smem, size = 0x4, offset = 0x4, fixed_abs, tag = 'smem constant byte address 0x4 - core index']
  #allocation1 [shape = 'u32[144,128]{1,0:T(1,128)}', space=vmem, size = 0x12000, scoped, tag = 'internal scratch']
  #allocation2 [shape = 'f32[1,1]{1,0:T(1,128)S(1)}', space=vmem, size = 0x200, scoped, tag = 'scoped memory for _lambda_.11']
  %s0 = inlined_call_operand.vmem [shape: f32[25,128], index: 0, kind: input, shape index: {}]
  %s1 = inlined_call_operand.vmem [shape: f32[1,25], index: 1, kind: input, shape index: {}]
  %s2 = inlined_call_operand.<no memory space> [shape: f32[1,1], index: 2, kind: input, shape index: {}]
  %s3 = inlined_call_operand.vmem [shape: f32[1,128], index: 3, kind: output, shape index: {}]
  %s4 = sld [smem:[#allocation0]]
  $region22: #{_lambda_.11} parent=0
    _
  %s6 = ssub.s32 1, %s4
  %s7 = scalar_select 0, %s6, %s4
  %v8 = vstv %s2
  %9 = vst [vmem:[#allocation2] sm:$0x1] %v8
  // Predicated region
  $region2: #{_lambda_.11} parent=0 // pred_check
    _
  $region3: #{_lambda_.11} parent=0 // pred_check_branch
    %11 = sbr.rel (0) target = $region5
  $region4: #{_lambda_.11} parent=0 // pred_region
    _
  $region5: #{_lambda_.11} parent=0 // pred_fallthru
    _
  // Predicated region
  $region6: #{_lambda_.11} parent=0 // pred_check
    _
  $region7: #{_lambda_.11} parent=0 // pred_check_branch
    %13 = sbr.rel (0) target = $region9
  $region8: #{_lambda_.11} parent=0 // pred_region
    _
  $region9: #{_lambda_.11} parent=0 // pred_fallthru
    _
  // Predicated region
  $region10: #{_lambda_.11} parent=0 // pred_check
    _
  $region11: #{_lambda_.11} parent=0 // pred_check_branch
    %15 = sbr.rel (0) target = $region13
  $region12: #{_lambda_.11} parent=0 // pred_region
    _
  $region13: #{_lambda_.11} parent=0 // pred_fallthru
    _
  %v16 = vld [vmem:[%s1] sm:$0x1]
  %v17 = vld [vmem:[%s0] sm:$0xff]
  %v18 = vld [vmem:[%s0 + $0x8] sm:$0xff]
  %v19 = vld [vmem:[%s0 + $0x10] sm:$0xff]
  %v20 = vld [vmem:[%s0 + $0x18] sm:$0x1]
  %v21 = vld [vmem:[#allocation2] sm:$0x1]
  %23 = vset.pattern.permute.xlu0 0
  %24 = vperm.xlu0 %23, %v21
  %v25 = vpop.permute.xlu0 %24
  %v27 = vlaneseq
  %v28 = vshrl.u32 %v27, 7
  %v29 = vsub.s32 0, %v28
  %v30 = vrot.slane %v25, %v29
  %vm31 = vcmask 203776
  %v33 = vsel %vm31, %v16, 0
  %vm35 = vcmask 1040384
  %v37 = vsel %vm35, %v20, 0
  %39 = vmatprep.subr.mxu0 0.0
  %40 = vmatpush1.msra.mxu0 %v17
  %41 = vmatprep.subr.mxu0 0.0
  %42 = vmatpush1.msra.mxu0 %v18
  %43 = vmatprep.subr.mxu0 0.0
  %44 = vmatpush1.msra.mxu0 %v19
  %45 = vmatprep.subr.mxu0 0.0
  %46 = vmatpush1.msra.mxu0 %v37
  %47 = vmatprep.subr.mxu0 0.0
  %48 = vmatpush1.msra.mxu0 0.0
  %49 = vmatprep.subr.mxu0 0.0
  %50 = vmatpush1.msra.mxu0 0.0
  %51 = vmatprep.subr.mxu0 0.0
  %52 = vmatpush1.msra.mxu0 0.0
  %53 = vmatprep.subr.mxu0 0.0
  %54 = vmatpush1.msra.mxu0 0.0
  %55 = vmatprep.subr.mxu0 0.0
  %56 = vmatpush1.msra.mxu0 0.0
  %57 = vmatprep.subr.mxu0 0.0
  %58 = vmatpush1.msra.mxu0 0.0
  %59 = vmatprep.subr.mxu0 0.0
  %60 = vmatpush1.msra.mxu0 0.0
  %61 = vmatprep.subr.mxu0 0.0
  %62 = vmatpush1.msra.mxu0 0.0
  %63 = vmatprep.subr.mxu0 0.0
  %64 = vmatpush1.msra.mxu0 0.0
  %65 = vmatprep.subr.mxu0 0.0
  %66 = vmatpush1.msra.mxu0 0.0
  %67 = vmatprep.subr.mxu0 0.0
  %68 = vmatpush1.msra.mxu0 0.0
  %69 = vmatprep.subr.mxu0 0.0
  %70 = vmatpush1.msra.mxu0 0.0
  %71 = vmatprep.subr.mxu0 0.0
  %72 = vmatpush1.msra.mxu0 0.0
  %73 = vmatprep.subr.mxu0 0.0
  %74 = vmatpush1.msra.mxu0 0.0
  %75 = vmatprep.subr.mxu0 0.0
  %76 = vmatpush1.msra.mxu0 0.0
  %77 = vmatprep.subr.mxu0 0.0
  %78 = vmatpush1.msra.mxu0 0.0
  %79 = vmatprep.subr.mxu0 0.0
  %80 = vmatpush1.msra.mxu0 0.0
  %81 = vmatprep.subr.mxu0 0.0
  %82 = vmatpush1.msra.mxu0 0.0
  %83 = vmatprep.subr.mxu0 0.0
  %84 = vmatpush1.msra.mxu0 0.0
  %85 = vmatprep.subr.mxu0 0.0
  %86 = vmatpush1.msra.mxu0 0.0
  %87 = vmatprep.subr.mxu0 0.0
  %88 = vmatpush1.msra.mxu0 0.0
  %89 = vmatprep.subr.mxu0 0.0
  %90 = vmatpush1.msra.mxu0 0.0
  %91 = vmatprep.subr.mxu0 0.0
  %92 = vmatpush1.msra.mxu0 0.0
  %93 = vmatprep.subr.mxu0 0.0
  %94 = vmatpush1.msra.mxu0 0.0
  %95 = vmatprep.subr.mxu0 0.0
  %96 = vmatpush1.msra.mxu0 0.0
  %97 = vmatprep.subr.mxu0 0.0
  %98 = vmatpush1.msra.mxu0 0.0
  %99 = vmatprep.subr.mxu0 0.0
  %100 = vmatpush1.msra.mxu0 0.0
  %101 = vmatprep.subr.mxu0 0.0
  %102 = vmatpush1.msra.mxu0 0.0
  %103 = vmatprep.mubr.f32.mxu0 0.0
  %104 = vmatmul.mubr.f32.gmra.mrb[0].mxu0 %v33
  %v105 = vpop.f32.mrb[0].mxu0
  %v106 = vadd.f32 %v30, %v105
  %v107 = vpop.f32.mrb[0].mxu0
  %108 = vdwg.mxu0
  %v109 = vmax.f32 %v106, 0.0
  %110 = vst [vmem:[%s3] sm:$0x1] %v109
  // Predicated region
  $region14: #{_lambda_.11} parent=0 // pred_check
    _
  $region15: #{_lambda_.11} parent=0 // pred_check_branch
    %112 = sbr.rel (0) target = $region17
  $region16: #{_lambda_.11} parent=0 // pred_region
    _
  $region17: #{_lambda_.11} parent=0 // pred_fallthru
    _
  // Predicated region
  $region18: #{_lambda_.11} parent=0 // pred_check
    _
  $region19: #{_lambda_.11} parent=0 // pred_check_branch
    %114 = sbr.rel (0) target = $region21
  $region20: #{_lambda_.11} parent=0 // pred_region
    _
  $region21: #{_lambda_.11} parent=0 // pred_fallthru
    _

// kernel: _lambda_.12
$region0: #{_lambda_.12}
  #allocation0 [shape = 'u32[]', space=smem, size = 0x4, offset = 0x4, fixed_abs, tag = 'smem constant byte address 0x4 - core index']
  #allocation1 [shape = 'u32[144,128]{1,0:T(1,128)}', space=vmem, size = 0x12000, scoped, tag = 'internal scratch']
  #allocation2 [shape = 'f32[1,1]{1,0:T(1,128)S(1)}', space=vmem, size = 0x200, scoped, tag = 'scoped memory for _lambda_.12']
  %s0 = inlined_call_operand.vmem [shape: f32[9,128], index: 0, kind: input, shape index: {}]
  %s1 = inlined_call_operand.vmem [shape: f32[1,9], index: 1, kind: input, shape index: {}]
  %s2 = inlined_call_operand.<no memory space> [shape: f32[1,1], index: 2, kind: input, shape index: {}]
  %s3 = inlined_call_operand.vmem [shape: f32[1,128], index: 3, kind: output, shape index: {}]
  %s4 = sld [smem:[#allocation0]]
  $region22: #{_lambda_.12} parent=0
    _
  %s6 = ssub.s32 1, %s4
  %s7 = scalar_select 0, %s6, %s4
  %v8 = vstv %s2
  %9 = vst [vmem:[#allocation2] sm:$0x1] %v8
  // Predicated region
  $region2: #{_lambda_.12} parent=0 // pred_check
    _
  $region3: #{_lambda_.12} parent=0 // pred_check_branch
    %11 = sbr.rel (0) target = $region5
  $region4: #{_lambda_.12} parent=0 // pred_region
    _
  $region5: #{_lambda_.12} parent=0 // pred_fallthru
    _
  // Predicated region
  $region6: #{_lambda_.12} parent=0 // pred_check
    _
  $region7: #{_lambda_.12} parent=0 // pred_check_branch
    %13 = sbr.rel (0) target = $region9
  $region8: #{_lambda_.12} parent=0 // pred_region
    _
  $region9: #{_lambda_.12} parent=0 // pred_fallthru
    _
  // Predicated region
  $region10: #{_lambda_.12} parent=0 // pred_check
    _
  $region11: #{_lambda_.12} parent=0 // pred_check_branch
    %15 = sbr.rel (0) target = $region13
  $region12: #{_lambda_.12} parent=0 // pred_region
    _
  $region13: #{_lambda_.12} parent=0 // pred_fallthru
    _
  %v16 = vld [vmem:[%s1] sm:$0x1]
  %v17 = vld [vmem:[%s0] sm:$0xff]
  %v18 = vld [vmem:[%s0 + $0x8] sm:$0x1]
  %v19 = vld [vmem:[#allocation2] sm:$0x1]
  %21 = vset.pattern.permute.xlu0 0
  %22 = vperm.xlu0 %21, %v19
  %v23 = vpop.permute.xlu0 %22
  %v25 = vlaneseq
  %v26 = vshrl.u32 %v25, 7
  %v27 = vsub.s32 0, %v26
  %v28 = vrot.slane %v23, %v27
  %vm29 = vcmask 72704
  %v31 = vsel %vm29, %v16, 0
  %vm33 = vcmask 1040384
  %v35 = vsel %vm33, %v18, 0
  %37 = vmatprep.subr.mxu0 0.0
  %38 = vmatpush1.msra.mxu0 %v17
  %39 = vmatprep.subr.mxu0 0.0
  %40 = vmatpush1.msra.mxu0 %v35
  %41 = vmatprep.subr.mxu0 0.0
  %42 = vmatpush1.msra.mxu0 0.0
  %43 = vmatprep.subr.mxu0 0.0
  %44 = vmatpush1.msra.mxu0 0.0
  %45 = vmatprep.subr.mxu0 0.0
  %46 = vmatpush1.msra.mxu0 0.0
  %47 = vmatprep.subr.mxu0 0.0
  %48 = vmatpush1.msra.mxu0 0.0
  %49 = vmatprep.subr.mxu0 0.0
  %50 = vmatpush1.msra.mxu0 0.0
  %51 = vmatprep.subr.mxu0 0.0
  %52 = vmatpush1.msra.mxu0 0.0
  %53 = vmatprep.subr.mxu0 0.0
  %54 = vmatpush1.msra.mxu0 0.0
  %55 = vmatprep.subr.mxu0 0.0
  %56 = vmatpush1.msra.mxu0 0.0
  %57 = vmatprep.subr.mxu0 0.0
  %58 = vmatpush1.msra.mxu0 0.0
  %59 = vmatprep.subr.mxu0 0.0
  %60 = vmatpush1.msra.mxu0 0.0
  %61 = vmatprep.subr.mxu0 0.0
  %62 = vmatpush1.msra.mxu0 0.0
  %63 = vmatprep.subr.mxu0 0.0
  %64 = vmatpush1.msra.mxu0 0.0
  %65 = vmatprep.subr.mxu0 0.0
  %66 = vmatpush1.msra.mxu0 0.0
  %67 = vmatprep.subr.mxu0 0.0
  %68 = vmatpush1.msra.mxu0 0.0
  %69 = vmatprep.subr.mxu0 0.0
  %70 = vmatpush1.msra.mxu0 0.0
  %71 = vmatprep.subr.mxu0 0.0
  %72 = vmatpush1.msra.mxu0 0.0
  %73 = vmatprep.subr.mxu0 0.0
  %74 = vmatpush1.msra.mxu0 0.0
  %75 = vmatprep.subr.mxu0 0.0
  %76 = vmatpush1.msra.mxu0 0.0
  %77 = vmatprep.subr.mxu0 0.0
  %78 = vmatpush1.msra.mxu0 0.0
  %79 = vmatprep.subr.mxu0 0.0
  %80 = vmatpush1.msra.mxu0 0.0
  %81 = vmatprep.subr.mxu0 0.0
  %82 = vmatpush1.msra.mxu0 0.0
  %83 = vmatprep.subr.mxu0 0.0
  %84 = vmatpush1.msra.mxu0 0.0
  %85 = vmatprep.subr.mxu0 0.0
  %86 = vmatpush1.msra.mxu0 0.0
  %87 = vmatprep.subr.mxu0 0.0
  %88 = vmatpush1.msra.mxu0 0.0
  %89 = vmatprep.subr.mxu0 0.0
  %90 = vmatpush1.msra.mxu0 0.0
  %91 = vmatprep.subr.mxu0 0.0
  %92 = vmatpush1.msra.mxu0 0.0
  %93 = vmatprep.subr.mxu0 0.0
  %94 = vmatpush1.msra.mxu0 0.0
  %95 = vmatprep.subr.mxu0 0.0
  %96 = vmatpush1.msra.mxu0 0.0
  %97 = vmatprep.subr.mxu0 0.0
  %98 = vmatpush1.msra.mxu0 0.0
  %99 = vmatprep.subr.mxu0 0.0
  %100 = vmatpush1.msra.mxu0 0.0
  %101 = vmatprep.mubr.f32.mxu0 0.0
  %102 = vmatmul.mubr.f32.gmra.mrb[0].mxu0 %v31
  %v103 = vpop.f32.mrb[0].mxu0
  %v104 = vadd.f32 %v28, %v103
  %v105 = vpop.f32.mrb[0].mxu0
  %106 = vdwg.mxu0
  %v107 = vmax.f32 %v104, 0.0
  %108 = vst [vmem:[%s3] sm:$0x1] %v107
  // Predicated region
  $region14: #{_lambda_.12} parent=0 // pred_check
    _
  $region15: #{_lambda_.12} parent=0 // pred_check_branch
    %110 = sbr.rel (0) target = $region17
  $region16: #{_lambda_.12} parent=0 // pred_region
    _
  $region17: #{_lambda_.12} parent=0 // pred_fallthru
    _
  // Predicated region
  $region18: #{_lambda_.12} parent=0 // pred_check
    _
  $region19: #{_lambda_.12} parent=0 // pred_check_branch
    %112 = sbr.rel (0) target = $region21
  $region20: #{_lambda_.12} parent=0 // pred_region
    _
  $region21: #{_lambda_.12} parent=0 // pred_fallthru
    _

// kernel: _lambda_.15
$region0: #{_lambda_.15}
  #allocation0 [shape = 'u32[]', space=smem, size = 0x4, offset = 0x4, fixed_abs, tag = 'smem constant byte address 0x4 - core index']
  #allocation1 [shape = 'u32[144,128]{1,0:T(1,128)}', space=vmem, size = 0x12000, scoped, tag = 'internal scratch']
  %s0 = inlined_call_operand.vmem [shape: f32[2,2,2], index: 0, kind: input, shape index: {}]
  %s1 = inlined_call_operand.vmem [shape: f32[4,2], index: 1, kind: input, shape index: {}]
  %s2 = inlined_call_operand.vmem [shape: f32[2,4], index: 2, kind: input, shape index: {}]
  %s3 = inlined_call_operand.vmem [shape: f32[2,4,4], index: 3, kind: input, shape index: {}]
  %s4 = inlined_call_operand.vmem [shape: f32[2,4,4], index: 4, kind: output, shape index: {}]
  %s5 = sld [smem:[#allocation0]]
  $region26: #{_lambda_.15} parent=0
    _
  %s7 = ssub.s32 1, %s5
  %s8 = scalar_select 0, %s7, %s5
  // Predicated region
  $region2: #{_lambda_.15} parent=0 // pred_check
    _
  $region3: #{_lambda_.15} parent=0 // pred_check_branch
    %10 = sbr.rel (0) target = $region5
  $region4: #{_lambda_.15} parent=0 // pred_region
    _
  $region5: #{_lambda_.15} parent=0 // pred_fallthru
    _
  // Predicated region
  $region6: #{_lambda_.15} parent=0 // pred_check
    _
  $region7: #{_lambda_.15} parent=0 // pred_check_branch
    %12 = sbr.rel (0) target = $region9
  $region8: #{_lambda_.15} parent=0 // pred_region
    _
  $region9: #{_lambda_.15} parent=0 // pred_fallthru
    _
  // Predicated region
  $region10: #{_lambda_.15} parent=0 // pred_check
    _
  $region11: #{_lambda_.15} parent=0 // pred_check_branch
    %14 = sbr.rel (0) target = $region13
  $region12: #{_lambda_.15} parent=0 // pred_region
    _
  $region13: #{_lambda_.15} parent=0 // pred_fallthru
    _
  // Predicated region
  $region14: #{_lambda_.15} parent=0 // pred_check
    _
  $region15: #{_lambda_.15} parent=0 // pred_check_branch
    %16 = sbr.rel (0) target = $region17
  $region16: #{_lambda_.15} parent=0 // pred_region
    _
  $region17: #{_lambda_.15} parent=0 // pred_fallthru
    _
  %v17 = vld [vmem:[%s1] sm:$0xf]
  %v18 = vld [vmem:[%s0] sm:$0x3]
  %vm19 = vcmask 15360
  %v21 = vsel %vm19, %v17, 0
  %vm23 = vcmask 1041408
  %v25 = vsel %vm23, %v18, 0
  %27 = vmatprep.subr.mxu0 0.0
  %28 = vmatpush1.msra.mxu0 %v25
  %29 = vmatprep.subr.mxu0 0.0
  %30 = vmatpush1.msra.mxu0 0.0
  %31 = vmatprep.subr.mxu0 0.0
  %32 = vmatpush1.msra.mxu0 0.0
  %33 = vmatprep.subr.mxu0 0.0
  %34 = vmatpush1.msra.mxu0 0.0
  %35 = vmatprep.subr.mxu0 0.0
  %36 = vmatpush1.msra.mxu0 0.0
  %37 = vmatprep.subr.mxu0 0.0
  %38 = vmatpush1.msra.mxu0 0.0
  %39 = vmatprep.subr.mxu0 0.0
  %40 = vmatpush1.msra.mxu0 0.0
  %41 = vmatprep.subr.mxu0 0.0
  %42 = vmatpush1.msra.mxu0 0.0
  %43 = vmatprep.subr.mxu0 0.0
  %44 = vmatpush1.msra.mxu0 0.0
  %45 = vmatprep.subr.mxu0 0.0
  %46 = vmatpush1.msra.mxu0 0.0
  %47 = vmatprep.subr.mxu0 0.0
  %48 = vmatpush1.msra.mxu0 0.0
  %49 = vmatprep.subr.mxu0 0.0
  %50 = vmatpush1.msra.mxu0 0.0
  %51 = vmatprep.subr.mxu0 0.0
  %52 = vmatpush1.msra.mxu0 0.0
  %53 = vmatprep.subr.mxu0 0.0
  %54 = vmatpush1.msra.mxu0 0.0
  %55 = vmatprep.subr.mxu0 0.0
  %56 = vmatpush1.msra.mxu0 0.0
  %57 = vmatprep.subr.mxu0 0.0
  %58 = vmatpush1.msra.mxu0 0.0
  %59 = vmatprep.subr.mxu0 0.0
  %60 = vmatpush1.msra.mxu0 0.0
  %61 = vmatprep.subr.mxu0 0.0
  %62 = vmatpush1.msra.mxu0 0.0
  %63 = vmatprep.subr.mxu0 0.0
  %64 = vmatpush1.msra.mxu0 0.0
  %65 = vmatprep.subr.mxu0 0.0
  %66 = vmatpush1.msra.mxu0 0.0
  %67 = vmatprep.subr.mxu0 0.0
  %68 = vmatpush1.msra.mxu0 0.0
  %69 = vmatprep.subr.mxu0 0.0
  %70 = vmatpush1.msra.mxu0 0.0
  %71 = vmatprep.subr.mxu0 0.0
  %72 = vmatpush1.msra.mxu0 0.0
  %73 = vmatprep.subr.mxu0 0.0
  %74 = vmatpush1.msra.mxu0 0.0
  %75 = vmatprep.subr.mxu0 0.0
  %76 = vmatpush1.msra.mxu0 0.0
  %77 = vmatprep.subr.mxu0 0.0
  %78 = vmatpush1.msra.mxu0 0.0
  %79 = vmatprep.subr.mxu0 0.0
  %80 = vmatpush1.msra.mxu0 0.0
  %81 = vmatprep.subr.mxu0 0.0
  %82 = vmatpush1.msra.mxu0 0.0
  %83 = vmatprep.subr.mxu0 0.0
  %84 = vmatpush1.msra.mxu0 0.0
  %85 = vmatprep.subr.mxu0 0.0
  %86 = vmatpush1.msra.mxu0 0.0
  %87 = vmatprep.subr.mxu0 0.0
  %88 = vmatpush1.msra.mxu0 0.0
  %89 = vmatprep.subr.mxu0 0.0
  %90 = vmatpush1.msra.mxu0 0.0
  %91 = vmatprep.mubr.f32.mxu0 0.0
  %92 = vmatmul.mubr.f32.gmra.mrb[0].mxu0 %v21
  %v93 = vpop.f32.mrb[0].mxu0
  %v94 = vadd.f32 0.0, %v93
  %v95 = vpop.f32.mrb[0].mxu0
  %96 = vdwg.mxu0
  %v97 = vld [vmem:[%s2] sm:$0x3]
  %v98 = vld [vmem:[%s3] sm:$0xf]
  %v100 = vsel %vm19, %v94, 0
  %v103 = vsel %vm23, %v97, 0
  %105 = vmatprep.subr.mxu0 0.0
  %106 = vmatpush1.msra.mxu0 %v103
  %107 = vmatprep.subr.mxu0 0.0
  %108 = vmatpush1.msra.mxu0 0.0
  %109 = vmatprep.subr.mxu0 0.0
  %110 = vmatpush1.msra.mxu0 0.0
  %111 = vmatprep.subr.mxu0 0.0
  %112 = vmatpush1.msra.mxu0 0.0
  %113 = vmatprep.subr.mxu0 0.0
  %114 = vmatpush1.msra.mxu0 0.0
  %115 = vmatprep.subr.mxu0 0.0
  %116 = vmatpush1.msra.mxu0 0.0
  %117 = vmatprep.subr.mxu0 0.0
  %118 = vmatpush1.msra.mxu0 0.0
  %119 = vmatprep.subr.mxu0 0.0
  %120 = vmatpush1.msra.mxu0 0.0
  %121 = vmatprep.subr.mxu0 0.0
  %122 = vmatpush1.msra.mxu0 0.0
  %123 = vmatprep.subr.mxu0 0.0
  %124 = vmatpush1.msra.mxu0 0.0
  %125 = vmatprep.subr.mxu0 0.0
  %126 = vmatpush1.msra.mxu0 0.0
  %127 = vmatprep.subr.mxu0 0.0
  %128 = vmatpush1.msra.mxu0 0.0
  %129 = vmatprep.subr.mxu0 0.0
  %130 = vmatpush1.msra.mxu0 0.0
  %131 = vmatprep.subr.mxu0 0.0
  %132 = vmatpush1.msra.mxu0 0.0
  %133 = vmatprep.subr.mxu0 0.0
  %134 = vmatpush1.msra.mxu0 0.0
  %135 = vmatprep.subr.mxu0 0.0
  %136 = vmatpush1.msra.mxu0 0.0
  %137 = vmatprep.subr.mxu0 0.0
  %138 = vmatpush1.msra.mxu0 0.0
  %139 = vmatprep.subr.mxu0 0.0
  %140 = vmatpush1.msra.mxu0 0.0
  %141 = vmatprep.subr.mxu0 0.0
  %142 = vmatpush1.msra.mxu0 0.0
  %143 = vmatprep.subr.mxu0 0.0
  %144 = vmatpush1.msra.mxu0 0.0
  %145 = vmatprep.subr.mxu0 0.0
  %146 = vmatpush1.msra.mxu0 0.0
  %147 = vmatprep.subr.mxu0 0.0
  %148 = vmatpush1.msra.mxu0 0.0
  %149 = vmatprep.subr.mxu0 0.0
  %150 = vmatpush1.msra.mxu0 0.0
  %151 = vmatprep.subr.mxu0 0.0
  %152 = vmatpush1.msra.mxu0 0.0
  %153 = vmatprep.subr.mxu0 0.0
  %154 = vmatpush1.msra.mxu0 0.0
  %155 = vmatprep.subr.mxu0 0.0
  %156 = vmatpush1.msra.mxu0 0.0
  %157 = vmatprep.subr.mxu0 0.0
  %158 = vmatpush1.msra.mxu0 0.0
  %159 = vmatprep.subr.mxu0 0.0
  %160 = vmatpush1.msra.mxu0 0.0
  %161 = vmatprep.subr.mxu0 0.0
  %162 = vmatpush1.msra.mxu0 0.0
  %163 = vmatprep.subr.mxu0 0.0
  %164 = vmatpush1.msra.mxu0 0.0
  %165 = vmatprep.subr.mxu0 0.0
  %166 = vmatpush1.msra.mxu0 0.0
  %167 = vmatprep.subr.mxu0 0.0
  %168 = vmatpush1.msra.mxu0 0.0
  %169 = vmatprep.mubr.f32.mxu0 0.0
  %170 = vmatmul.mubr.f32.gmra.mrb[0].mxu0 %v100
  %v171 = vpop.f32.mrb[0].mxu0
  %v172 = vadd.f32 %v98, %v171
  %v173 = vpop.f32.mrb[0].mxu0
  %174 = vdwg.mxu0
  %vm175 = vcmask 27648
  %176 = vst.msk [vmem:[%s4] sm:$0xf] %vm175, %v172
  %v177 = vld [vmem:[%s1] sm:$0xf]
  %s178 = scalar_lea.vmem %s0, 2
  %v179 = vld [vmem:[%s178] sm:$0x3]
  %v181 = vsel %vm19, %v177, 0
  %v184 = vsel %vm23, %v179, 0
  %186 = vmatprep.subr.mxu0 0.0
  %187 = vmatpush1.msra.mxu0 %v184
  %188 = vmatprep.subr.mxu0 0.0
  %189 = vmatpush1.msra.mxu0 0.0
  %190 = vmatprep.subr.mxu0 0.0
  %191 = vmatpush1.msra.mxu0 0.0
  %192 = vmatprep.subr.mxu0 0.0
  %193 = vmatpush1.msra.mxu0 0.0
  %194 = vmatprep.subr.mxu0 0.0
  %195 = vmatpush1.msra.mxu0 0.0
  %196 = vmatprep.subr.mxu0 0.0
  %197 = vmatpush1.msra.mxu0 0.0
  %198 = vmatprep.subr.mxu0 0.0
  %199 = vmatpush1.msra.mxu0 0.0
  %200 = vmatprep.subr.mxu0 0.0
  %201 = vmatpush1.msra.mxu0 0.0
  %202 = vmatprep.subr.mxu0 0.0
  %203 = vmatpush1.msra.mxu0 0.0
  %204 = vmatprep.subr.mxu0 0.0
  %205 = vmatpush1.msra.mxu0 0.0
  %206 = vmatprep.subr.mxu0 0.0
  %207 = vmatpush1.msra.mxu0 0.0
  %208 = vmatprep.subr.mxu0 0.0
  %209 = vmatpush1.msra.mxu0 0.0
  %210 = vmatprep.subr.mxu0 0.0
  %211 = vmatpush1.msra.mxu0 0.0
  %212 = vmatprep.subr.mxu0 0.0
  %213 = vmatpush1.msra.mxu0 0.0
  %214 = vmatprep.subr.mxu0 0.0
  %215 = vmatpush1.msra.mxu0 0.0
  %216 = vmatprep.subr.mxu0 0.0
  %217 = vmatpush1.msra.mxu0 0.0
  %218 = vmatprep.subr.mxu0 0.0
  %219 = vmatpush1.msra.mxu0 0.0
  %220 = vmatprep.subr.mxu0 0.0
  %221 = vmatpush1.msra.mxu0 0.0
  %222 = vmatprep.subr.mxu0 0.0
  %223 = vmatpush1.msra.mxu0 0.0
  %224 = vmatprep.subr.mxu0 0.0
  %225 = vmatpush1.msra.mxu0 0.0
  %226 = vmatprep.subr.mxu0 0.0
  %227 = vmatpush1.msra.mxu0 0.0
  %228 = vmatprep.subr.mxu0 0.0
  %229 = vmatpush1.msra.mxu0 0.0
  %230 = vmatprep.subr.mxu0 0.0
  %231 = vmatpush1.msra.mxu0 0.0
  %232 = vmatprep.subr.mxu0 0.0
  %233 = vmatpush1.msra.mxu0 0.0
  %234 = vmatprep.subr.mxu0 0.0
  %235 = vmatpush1.msra.mxu0 0.0
  %236 = vmatprep.subr.mxu0 0.0
  %237 = vmatpush1.msra.mxu0 0.0
  %238 = vmatprep.subr.mxu0 0.0
  %239 = vmatpush1.msra.mxu0 0.0
  %240 = vmatprep.subr.mxu0 0.0
  %241 = vmatpush1.msra.mxu0 0.0
  %242 = vmatprep.subr.mxu0 0.0
  %243 = vmatpush1.msra.mxu0 0.0
  %244 = vmatprep.subr.mxu0 0.0
  %245 = vmatpush1.msra.mxu0 0.0
  %246 = vmatprep.subr.mxu0 0.0
  %247 = vmatpush1.msra.mxu0 0.0
  %248 = vmatprep.subr.mxu0 0.0
  %249 = vmatpush1.msra.mxu0 0.0
  %250 = vmatprep.mubr.f32.mxu0 0.0
  %251 = vmatmul.mubr.f32.gmra.mrb[0].mxu0 %v181
  %v252 = vpop.f32.mrb[0].mxu0
  %v253 = vadd.f32 0.0, %v252
  %v254 = vpop.f32.mrb[0].mxu0
  %255 = vdwg.mxu0
  %v256 = vld [vmem:[%s2] sm:$0x3]
  %s257 = scalar_lea.vmem %s3, 4
  %v258 = vld [vmem:[%s257] sm:$0xf]
  %v260 = vsel %vm19, %v253, 0
  %v263 = vsel %vm23, %v256, 0
  %265 = vmatprep.subr.mxu0 0.0
  %266 = vmatpush1.msra.mxu0 %v263
  %267 = vmatprep.subr.mxu0 0.0
  %268 = vmatpush1.msra.mxu0 0.0
  %269 = vmatprep.subr.mxu0 0.0
  %270 = vmatpush1.msra.mxu0 0.0
  %271 = vmatprep.subr.mxu0 0.0
  %272 = vmatpush1.msra.mxu0 0.0
  %273 = vmatprep.subr.mxu0 0.0
  %274 = vmatpush1.msra.mxu0 0.0
  %275 = vmatprep.subr.mxu0 0.0
  %276 = vmatpush1.msra.mxu0 0.0
  %277 = vmatprep.subr.mxu0 0.0
  %278 = vmatpush1.msra.mxu0 0.0
  %279 = vmatprep.subr.mxu0 0.0
  %280 = vmatpush1.msra.mxu0 0.0
  %281 = vmatprep.subr.mxu0 0.0
  %282 = vmatpush1.msra.mxu0 0.0
  %283 = vmatprep.subr.mxu0 0.0
  %284 = vmatpush1.msra.mxu0 0.0
  %285 = vmatprep.subr.mxu0 0.0
  %286 = vmatpush1.msra.mxu0 0.0
  %287 = vmatprep.subr.mxu0 0.0
  %288 = vmatpush1.msra.mxu0 0.0
  %289 = vmatprep.subr.mxu0 0.0
  %290 = vmatpush1.msra.mxu0 0.0
  %291 = vmatprep.subr.mxu0 0.0
  %292 = vmatpush1.msra.mxu0 0.0
  %293 = vmatprep.subr.mxu0 0.0
  %294 = vmatpush1.msra.mxu0 0.0
  %295 = vmatprep.subr.mxu0 0.0
  %296 = vmatpush1.msra.mxu0 0.0
  %297 = vmatprep.subr.mxu0 0.0
  %298 = vmatpush1.msra.mxu0 0.0
  %299 = vmatprep.subr.mxu0 0.0
  %300 = vmatpush1.msra.mxu0 0.0
  %301 = vmatprep.subr.mxu0 0.0
  %302 = vmatpush1.msra.mxu0 0.0
  %303 = vmatprep.subr.mxu0 0.0
  %304 = vmatpush1.msra.mxu0 0.0
  %305 = vmatprep.subr.mxu0 0.0
  %306 = vmatpush1.msra.mxu0 0.0
  %307 = vmatprep.subr.mxu0 0.0
  %308 = vmatpush1.msra.mxu0 0.0
  %309 = vmatprep.subr.mxu0 0.0
  %310 = vmatpush1.msra.mxu0 0.0
  %311 = vmatprep.subr.mxu0 0.0
  %312 = vmatpush1.msra.mxu0 0.0
  %313 = vmatprep.subr.mxu0 0.0
  %314 = vmatpush1.msra.mxu0 0.0
  %315 = vmatprep.subr.mxu0 0.0
  %316 = vmatpush1.msra.mxu0 0.0
  %317 = vmatprep.subr.mxu0 0.0
  %318 = vmatpush1.msra.mxu0 0.0
  %319 = vmatprep.subr.mxu0 0.0
  %320 = vmatpush1.msra.mxu0 0.0
  %321 = vmatprep.subr.mxu0 0.0
  %322 = vmatpush1.msra.mxu0 0.0
  %323 = vmatprep.subr.mxu0 0.0
  %324 = vmatpush1.msra.mxu0 0.0
  %325 = vmatprep.subr.mxu0 0.0
  %326 = vmatpush1.msra.mxu0 0.0
  %327 = vmatprep.subr.mxu0 0.0
  %328 = vmatpush1.msra.mxu0 0.0
  %329 = vmatprep.mubr.f32.mxu0 0.0
  %330 = vmatmul.mubr.f32.gmra.mrb[0].mxu0 %v260
  %v331 = vpop.f32.mrb[0].mxu0
  %v332 = vadd.f32 %v258, %v331
  %v333 = vpop.f32.mrb[0].mxu0
  %334 = vdwg.mxu0
  %s335 = scalar_lea.vmem %s4, 4
  %336 = vst.msk [vmem:[%s335] sm:$0xf] %vm175, %v332
  // Predicated region
  $region18: #{_lambda_.15} parent=0 // pred_check
    _
  $region19: #{_lambda_.15} parent=0 // pred_check_branch
    %338 = sbr.rel (0) target = $region21
  $region20: #{_lambda_.15} parent=0 // pred_region
    _
  $region21: #{_lambda_.15} parent=0 // pred_fallthru
    _
  // Predicated region
  $region22: #{_lambda_.15} parent=0 // pred_check
    _
  $region23: #{_lambda_.15} parent=0 // pred_check_branch
    %340 = sbr.rel (0) target = $region25
  $region24: #{_lambda_.15} parent=0 // pred_region
    _
  $region25: #{_lambda_.15} parent=0 // pred_fallthru
    _

// kernel: _lambda_.9
$region0: #{_lambda_.9}
  #allocation0 [shape = 'u32[]', space=smem, size = 0x4, offset = 0x4, fixed_abs, tag = 'smem constant byte address 0x4 - core index']
  #allocation1 [shape = 'u32[144,128]{1,0:T(1,128)}', space=vmem, size = 0x12000, scoped, tag = 'internal scratch']
  %s0 = inlined_call_operand.vmem [shape: f32[2,4,256], index: 0, kind: input, shape index: {}]
  %s1 = inlined_call_operand.vmem [shape: f32[4,4], index: 1, kind: input, shape index: {}]
  %s2 = inlined_call_operand.vmem [shape: f32[4,1], index: 2, kind: input, shape index: {}]
  %s3 = inlined_call_operand.vmem [shape: f32[2,4,256], index: 3, kind: output, shape index: {}]
  %s4 = sld [smem:[#allocation0]]
  $region45: #{_lambda_.9} parent=0
    _
  %s6 = ssub.s32 1, %s4
  %s7 = scalar_select 0, %s6, %s4
  loop: start=0, step=1, limit=4
  $region2: #{_lambda_.9} parent=0 // loop_pre_header
    _
  $region3: #{_lambda_.9} parent=0 // loop_header
    %s9 = sphi 0, %s13
    %p10 = scmp.ge.s32.totalorder %s9, 4
    %s16 = sphi 0, %s28
    %s17 = sphi 0, %s24
    %s18 = sphi 0, %s16
    %s19 = sphi 0, %s17
    %s20 = sphi 0, %s18
    %s21 = sphi 0, %s19
    %s33 = sphi 0, %s35
    %s36 = sphi 0, %s33
    %s37 = sphi 0, %s36
    %s53 = sphi 0, %s37
    %s57 = sphi 0, %s57
    %s59 = sphi 0, %s57
    %s60 = sphi 0, %s59
    %s74 = sphi 0, %s60
    %s78 = sphi 0, %s78
    %s80 = sphi 0, %s78
    %s81 = sphi 0, %s80
    %s95 = sphi 0, %s81
    %s103 = sphi 0, %s105
    %s106 = sphi 0, %s103
    %s107 = sphi 0, %s106
    %s123 = sphi 0, %s107
  $region4: #{_lambda_.9} parent=0 // loop_header_branch
    %12 = sbr.rel (%p10) target = $region8
  $region5: #{_lambda_.9} parent=0 // loop_body
    %s14 = ssub.s32 %s9, 1
    %s15 = ssub.s32 %s9, 2
    %s22 = sadd.s32 1, %s17
    %p23 = scmp.ge.s32.totalorder %s22, 1
    %s24 = scalar_select %p23, 0, %s22
    %s25 = sadd.s32 1, %s16
    %s26 = scalar_select %p23, %s25, %s16
    %p27 = scmp.ge.s32.totalorder %s26, 2
    %s28 = scalar_select %p27, 0, %s26
    %s29 = ssub.s32 %s16, %s28
    %s30 = ssub.s32 %s17, %s24
    %s31 = sor.u32 %s29, %s30
    %p32 = scmp.eq.s32.totalorder %s31, 0
    %s34 = sadd.s32 %s33, 1
    %s35 = scalar_select %p32, %s33, %s34
    %p38 = pneg %p32
    %p39 = scmp.eq.s32.totalorder %s9, 1
    %p40 = por %p38, %p39
    %p41 = scmp.ne.s32.totalorder %s33, %s36
    %p42 = scmp.eq.s32.totalorder %s9, 0
    %p43 = por %p41, %p42
    %p44 = scmp.ne.s32.totalorder %s33, %s36
    %p45 = scmp.eq.s32.totalorder %s14, 1
    %p46 = por %p44, %p45
    %p47 = scmp.ne.s32.totalorder %s36, %s37
    %p48 = scmp.eq.s32.totalorder %s14, 0
    %p49 = por %p47, %p48
    %p50 = scmp.ne.s32.totalorder %s36, %s37
    %p51 = scmp.eq.s32.totalorder %s15, 1
    %p52 = por %p50, %p51
    %p54 = scmp.ne.s32.totalorder %s37, %s53
    %p55 = scmp.eq.s32.totalorder %s15, 0
    %p56 = por %p54, %p55
    %s58 = sadd.s32 %s57, 1
    %p61 = scmp.eq.s32.totalorder %s9, 1
    %p62 = scmp.ne.s32.totalorder %s57, %s59
    %p63 = scmp.eq.s32.totalorder %s9, 0
    %p64 = por %p62, %p63
    %p65 = scmp.ne.s32.totalorder %s57, %s59
    %p66 = scmp.eq.s32.totalorder %s14, 1
    %p67 = por %p65, %p66
    %p68 = scmp.ne.s32.totalorder %s59, %s60
    %p69 = scmp.eq.s32.totalorder %s14, 0
    %p70 = por %p68, %p69
    %p71 = scmp.ne.s32.totalorder %s59, %s60
    %p72 = scmp.eq.s32.totalorder %s15, 1
    %p73 = por %p71, %p72
    %p75 = scmp.ne.s32.totalorder %s60, %s74
    %p76 = scmp.eq.s32.totalorder %s15, 0
    %p77 = por %p75, %p76
    %s79 = sadd.s32 %s78, 1
    %p82 = scmp.eq.s32.totalorder %s9, 1
    %p83 = scmp.ne.s32.totalorder %s78, %s80
    %p84 = scmp.eq.s32.totalorder %s9, 0
    %p85 = por %p83, %p84
    %p86 = scmp.ne.s32.totalorder %s78, %s80
    %p87 = scmp.eq.s32.totalorder %s14, 1
    %p88 = por %p86, %p87
    %p89 = scmp.ne.s32.totalorder %s80, %s81
    %p90 = scmp.eq.s32.totalorder %s14, 0
    %p91 = por %p89, %p90
    %p92 = scmp.ne.s32.totalorder %s80, %s81
    %p93 = scmp.eq.s32.totalorder %s15, 1
    %p94 = por %p92, %p93
    %p96 = scmp.ne.s32.totalorder %s81, %s95
    %p97 = scmp.eq.s32.totalorder %s15, 0
    %p98 = por %p96, %p97
    %s99 = ssub.s32 %s16, %s28
    %s100 = ssub.s32 %s17, %s24
    %s101 = sor.u32 %s99, %s100
    %p102 = scmp.eq.s32.totalorder %s101, 0
    %s104 = sadd.s32 %s103, 1
    %s105 = scalar_select %p102, %s103, %s104
    %p108 = pneg %p102
    %p109 = scmp.eq.s32.totalorder %s9, 1
    %p110 = por %p108, %p109
    %p111 = scmp.ne.s32.totalorder %s103, %s106
    %p112 = scmp.eq.s32.totalorder %s9, 0
    %p113 = por %p111, %p112
    %p114 = scmp.ne.s32.totalorder %s103, %s106
    %p115 = scmp.eq.s32.totalorder %s14, 1
    %p116 = por %p114, %p115
    %p117 = scmp.ne.s32.totalorder %s106, %s107
    %p118 = scmp.eq.s32.totalorder %s14, 0
    %p119 = por %p117, %p118
    %p120 = scmp.ne.s32.totalorder %s106, %s107
    %p121 = scmp.eq.s32.totalorder %s15, 1
    %p122 = por %p120, %p121
    %p124 = scmp.ne.s32.totalorder %s107, %s123
    %p125 = scmp.eq.s32.totalorder %s15, 0
    %p126 = por %p124, %p125
    %p127 = scmp.le.s32.totalorder 1, %s9
    %p128 = scmp.lt.s32.totalorder %s9, 3
    %p129 = pnand %p127, %p128
    %p130 = pneg %p129
    // Predicated region
    $region9: #{_lambda_.9} parent=5 // pred_check
      _
    $region10: #{_lambda_.9} parent=5 // pred_check_branch
      %132 = sbr.rel (%p129) target = $region12
    $region11: #{_lambda_.9} parent=5 // pred_region
      %s133 = ssub.s32 %s9, 1
      // Predicated region
      $region13: #{_lambda_.9} parent=11 // pred_check
        %p134 = pneg %p70
      $region14: #{_lambda_.9} parent=11 // pred_check_branch
        %136 = sbr.rel (%p134) target = $region16
      $region15: #{_lambda_.9} parent=11 // pred_region
        _
      $region16: #{_lambda_.9} parent=11 // pred_fallthru
        _
      // Predicated region
      $region17: #{_lambda_.9} parent=11 // pred_check
        %p137 = pneg %p91
      $region18: #{_lambda_.9} parent=11 // pred_check_branch
        %139 = sbr.rel (%p137) target = $region20
      $region19: #{_lambda_.9} parent=11 // pred_region
        _
      $region20: #{_lambda_.9} parent=11 // pred_fallthru
        _
    $region12: #{_lambda_.9} parent=5 // pred_fallthru
      _
    %p140 = scmp.lt.s32.totalorder %s9, 2
    // Predicated region
    $region21: #{_lambda_.9} parent=5 // pred_check
      %p141 = pneg %p140
    $region22: #{_lambda_.9} parent=5 // pred_check_branch
      %143 = sbr.rel (%p141) target = $region24
    $region23: #{_lambda_.9} parent=5 // pred_region
      // Predicated region
      $region25: #{_lambda_.9} parent=23 // pred_check
        %p144 = pneg %p43
      $region26: #{_lambda_.9} parent=23 // pred_check_branch
        %146 = sbr.rel (%p144) target = $region28
      $region27: #{_lambda_.9} parent=23 // pred_region
        %s147 = smul.u32 2, %s17
        %p148 = scmp.lt.s32.totalorder %s16, 1
        %s149 = scalar_select %p148, %s16, 1
        %p150 = scmp.lt.s32.totalorder %s147, 1
        %s151 = scalar_select %p150, %s147, 1
        %s152 = smul.addr %s149, 2
        %s153 = sadd.s32 %s151, %s152
        %s154 = smul.addr %s153, 4
        %s155 = scalar_lea.vmem %s0, %s154
        %s156 = smul.u32 2, %s17
      $region28: #{_lambda_.9} parent=23 // pred_fallthru
        _
    $region24: #{_lambda_.9} parent=5 // pred_fallthru
      _
    %p157 = scmp.le.s32.totalorder 1, %s9
    %p158 = scmp.lt.s32.totalorder %s9, 3
    %p159 = pnand %p157, %p158
    %p160 = pneg %p159
    // Predicated region
    $region29: #{_lambda_.9} parent=5 // pred_check
      _
    $region30: #{_lambda_.9} parent=5 // pred_check_branch
      %162 = sbr.rel (%p159) target = $region32
    $region31: #{_lambda_.9} parent=5 // pred_region
      %s163 = ssub.s32 %s9, 1
      %s164 = smul.u32 2, %s19
      %p165 = scmp.lt.s32.totalorder %s18, 1
      %s166 = scalar_select %p165, %s18, 1
      %p167 = scmp.lt.s32.totalorder %s164, 1
      %s168 = scalar_select %p167, %s164, 1
      %s169 = smul.addr %s166, 2
      %s170 = sadd.s32 %s168, %s169
      %s171 = smul.addr %s170, 4
      %s172 = scalar_lea.vmem %s0, %s171
      %p173 = pneg %p49
      %p174 = pneg %p46
      %p175 = pneg %p70
      %p176 = pneg %p67
      %p177 = pneg %p91
      %p178 = pneg %p88
      %p179 = pneg %p119
      %p180 = pneg %p116
      %s181 = smul.u32 2, %s19
      %p182 = scmp.lt.s32.totalorder %s18, 1
      %s183 = scalar_select %p182, %s18, 1
      %p184 = scmp.lt.s32.totalorder %s181, 1
      %s185 = scalar_select %p184, %s181, 1
      %s186 = smul.addr %s183, 2
      %s187 = sadd.s32 %s185, %s186
      %s188 = smul.addr %s187, 4
      %s189 = scalar_lea.vmem %s3, %s188
      %s190 = smul.u32 2, %s19
      %p191 = scmp.lt.s32.totalorder %s18, 1
      %s192 = scalar_select %p191, %s18, 1
      %p193 = scmp.lt.s32.totalorder %s190, 1
      %s194 = scalar_select %p193, %s190, 1
      %s195 = smul.addr %s192, 2
      %s196 = sadd.s32 %s194, %s195
      %s197 = smul.addr %s196, 4
      %s198 = scalar_lea.vmem %s0, %s197
      %s199 = smul.u32 2, %s19
      %s200 = smul.u32 2, %s19
      %p201 = scmp.lt.s32.totalorder %s18, 1
      %s202 = scalar_select %p201, %s18, 1
      %p203 = scmp.lt.s32.totalorder %s200, 1
      %s204 = scalar_select %p203, %s200, 1
      %s205 = smul.addr %s202, 2
      %s206 = sadd.s32 %s204, %s205
      %s207 = smul.addr %s206, 4
      %s208 = scalar_lea.vmem %s3, %s207
      %s209 = smul.u32 2, %s19
      %v210 = vld [vmem:[%s1] sm:$0xf]
      %v211 = vld [vmem:[%s198] sm:$0xff]
      %v212 = vld [vmem:[%s2] sm:$0xf]
      %214 = vset.pattern.permute.xlu0 0
      %215 = vperm.xlu0 %214, %v212
      %v216 = vpop.permute.xlu0 %215
      %v219 = vcombine.high %v211, %v211
      %vm220 = vcmask 31744
      %v222 = vsel %vm220, %v210, 0
      %vm224 = vcmask 1043456
      %v225 = vsel %vm224, %v211, 0
      %v227 = vsel %vm224, %v219, 0
      %229 = vmatprep.subr.mxu0 %v227
      %230 = vmatpush1.msra.mxu0 %v225
      %231 = vmatprep.subr.mxu0 0.0
      %232 = vmatpush1.msra.mxu0 0.0
      %233 = vmatprep.subr.mxu0 0.0
      %234 = vmatpush1.msra.mxu0 0.0
      %235 = vmatprep.subr.mxu0 0.0
      %236 = vmatpush1.msra.mxu0 0.0
      %237 = vmatprep.subr.mxu0 0.0
      %238 = vmatpush1.msra.mxu0 0.0
      %239 = vmatprep.subr.mxu0 0.0
      %240 = vmatpush1.msra.mxu0 0.0
      %241 = vmatprep.subr.mxu0 0.0
      %242 = vmatpush1.msra.mxu0 0.0
      %243 = vmatprep.subr.mxu0 0.0
      %244 = vmatpush1.msra.mxu0 0.0
      %245 = vmatprep.subr.mxu0 0.0
      %246 = vmatpush1.msra.mxu0 0.0
      %247 = vmatprep.subr.mxu0 0.0
      %248 = vmatpush1.msra.mxu0 0.0
      %249 = vmatprep.subr.mxu0 0.0
      %250 = vmatpush1.msra.mxu0 0.0
      %251 = vmatprep.subr.mxu0 0.0
      %252 = vmatpush1.msra.mxu0 0.0
      %253 = vmatprep.subr.mxu0 0.0
      %254 = vmatpush1.msra.mxu0 0.0
      %255 = vmatprep.subr.mxu0 0.0
      %256 = vmatpush1.msra.mxu0 0.0
      %257 = vmatprep.subr.mxu0 0.0
      %258 = vmatpush1.msra.mxu0 0.0
      %259 = vmatprep.subr.mxu0 0.0
      %260 = vmatpush1.msra.mxu0 0.0
      %261 = vmatprep.subr.mxu0 0.0
      %262 = vmatpush1.msra.mxu0 0.0
      %263 = vmatprep.subr.mxu0 0.0
      %264 = vmatpush1.msra.mxu0 0.0
      %265 = vmatprep.subr.mxu0 0.0
      %266 = vmatpush1.msra.mxu0 0.0
      %267 = vmatprep.subr.mxu0 0.0
      %268 = vmatpush1.msra.mxu0 0.0
      %269 = vmatprep.subr.mxu0 0.0
      %270 = vmatpush1.msra.mxu0 0.0
      %271 = vmatprep.subr.mxu0 0.0
      %272 = vmatpush1.msra.mxu0 0.0
      %273 = vmatprep.subr.mxu0 0.0
      %274 = vmatpush1.msra.mxu0 0.0
      %275 = vmatprep.subr.mxu0 0.0
      %276 = vmatpush1.msra.mxu0 0.0
      %277 = vmatprep.subr.mxu0 0.0
      %278 = vmatpush1.msra.mxu0 0.0
      %279 = vmatprep.subr.mxu0 0.0
      %280 = vmatpush1.msra.mxu0 0.0
      %281 = vmatprep.subr.mxu0 0.0
      %282 = vmatpush1.msra.mxu0 0.0
      %283 = vmatprep.subr.mxu0 0.0
      %284 = vmatpush1.msra.mxu0 0.0
      %285 = vmatprep.subr.mxu0 0.0
      %286 = vmatpush1.msra.mxu0 0.0
      %287 = vmatprep.subr.mxu0 0.0
      %288 = vmatpush1.msra.mxu0 0.0
      %289 = vmatprep.subr.mxu0 0.0
      %290 = vmatpush1.msra.mxu0 0.0
      %291 = vmatprep.subr.mxu0 0.0
      %292 = vmatpush1.msra.mxu0 0.0
      %293 = vmatprep.mubr.f32.mxu0 0.0
      %294 = vmatmul.mubr.f32.gmra.mrb[0].mxu0 %v222
      %v295 = vpop.f32.mrb[0].mxu0
      %v296 = vadd.f32 %v216, %v295
      %v297 = vpop.f32.mrb[0].mxu0
      %v298 = vadd.f32 %v216, %v297
      %299 = vdwg.mxu0
      %v300 = vmax.f32 %v296, 0.0
      %v301 = vmax.f32 %v298, 0.0
      %v304 = vcombine.low %v300, %v301
      %306 = vst [vmem:[%s208] sm:$0xff] %v304
      %s307 = smul.u32 2, %s19
      %p308 = scmp.lt.s32.totalorder %s18, 1
      %s309 = scalar_select %p308, %s18, 1
      %p310 = scmp.lt.s32.totalorder %s307, 1
      %s311 = scalar_select %p310, %s307, 1
      %s312 = smul.addr %s309, 2
      %s313 = sadd.s32 %s311, %s312
      %s314 = smul.addr %s313, 4
      %s315 = scalar_lea.vmem %s3, %s314
      // Predicated region
      $region33: #{_lambda_.9} parent=31 // pred_check
        %p316 = pneg %p116
      $region34: #{_lambda_.9} parent=31 // pred_check_branch
        %318 = sbr.rel (%p316) target = $region36
      $region35: #{_lambda_.9} parent=31 // pred_region
        %s319 = smul.u32 2, %s19
      $region36: #{_lambda_.9} parent=31 // pred_fallthru
        _
    $region32: #{_lambda_.9} parent=5 // pred_fallthru
      _
    %p320 = scmp.le.s32.totalorder 2, %s9
    // Predicated region
    $region37: #{_lambda_.9} parent=5 // pred_check
      %p321 = pneg %p320
    $region38: #{_lambda_.9} parent=5 // pred_check_branch
      %323 = sbr.rel (%p321) target = $region40
    $region39: #{_lambda_.9} parent=5 // pred_region
      %s324 = ssub.s32 %s9, 2
      // Predicated region
      $region41: #{_lambda_.9} parent=39 // pred_check
        %p325 = pneg %p122
      $region42: #{_lambda_.9} parent=39 // pred_check_branch
        %327 = sbr.rel (%p325) target = $region44
      $region43: #{_lambda_.9} parent=39 // pred_region
        %s328 = smul.u32 2, %s21
        %p329 = scmp.lt.s32.totalorder %s20, 1
        %s330 = scalar_select %p329, %s20, 1
        %p331 = scmp.lt.s32.totalorder %s328, 1
        %s332 = scalar_select %p331, %s328, 1
        %s333 = smul.addr %s330, 2
        %s334 = sadd.s32 %s332, %s333
        %s335 = smul.addr %s334, 4
        %s336 = scalar_lea.vmem %s3, %s335
      $region44: #{_lambda_.9} parent=39 // pred_fallthru
        _
    $region40: #{_lambda_.9} parent=5 // pred_fallthru
      _
  $region6: #{_lambda_.9} parent=0 // loop_footer
    %s13 = sadd.s32 1, %s9
  $region7: #{_lambda_.9} parent=0 // loop_footer_branch
    %8 = sbr.rel target = $region3
  $region8: #{_lambda_.9} parent=0 // loop_exit
    _

// kernel: _lambda_.17
$region0: #{_lambda_.17}
  #allocation0 [shape = 'u32[]', space=smem, size = 0x4, offset = 0x4, fixed_abs, tag = 'smem constant byte address 0x4 - core index']
  #allocation1 [shape = 'u32[144,128]{1,0:T(1,128)}', space=vmem, size = 0x12000, scoped, tag = 'internal scratch']
  %s0 = inlined_call_operand.vmem [shape: f32[2,4,4], index: 0, kind: input, shape index: {}]
  %s1 = inlined_call_operand.vmem [shape: f32[2,8,8], index: 1, kind: input, shape index: {}]
  %s2 = inlined_call_operand.vmem [shape: f32[8,4], index: 2, kind: input, shape index: {}]
  %s3 = inlined_call_operand.vmem [shape: f32[4,8], index: 3, kind: input, shape index: {}]
  %s4 = inlined_call_operand.vmem [shape: f32[16,8], index: 4, kind: input, shape index: {}]
  %s5 = inlined_call_operand.vmem [shape: f32[8,16], index: 5, kind: input, shape index: {}]
  %s6 = inlined_call_operand.vmem [shape: f32[2,4,16,16], index: 6, kind: input, shape index: {}]
  %s7 = inlined_call_operand.vmem [shape: f32[2,4,16,16], index: 7, kind: input, shape index: {}]
  %s8 = inlined_call_operand.hbm [shape: f32[2,4,16,16], index: 8, kind: output, shape index: {}]
  %s9 = sld [smem:[#allocation0]]
  $region65: #{_lambda_.17} parent=0
    _
  %s11 = ssub.s32 1, %s9
  %s12 = scalar_select 0, %s11, %s9
  $region1: #{_lambda_.17} parent=0
    #allocation2 [shape = 'u8[65536]{0}', space=vmem, size = 0x10000, scoped, tag = 'output window, operand 0']
    #allocation3 [shape = 's32[2]{0}', space=sflag, size = 0x8, scoped, tag = 'scoped memory for _lambda_.17']
    %13 = vsyncpa [#allocation3], 0
    %s14 = scalar_lea.sflag [#allocation3], 1
    %15 = vsyncpa %s14, 0
    loop: start=0, step=1, limit=4
    $region2: #{_lambda_.17} parent=1 // loop_pre_header
      _
    $region3: #{_lambda_.17} parent=1 // loop_header
      %s17 = sphi 0, %s21
      %p18 = scmp.ge.s32.totalorder %s17, 4
      %s24 = sphi 0, %s36
      %s25 = sphi 0, %s32
      %s26 = sphi 0, %s24
      %s27 = sphi 0, %s25
      %s28 = sphi 0, %s26
      %s29 = sphi 0, %s27
      %s39 = sphi 0, %s41
      %s42 = sphi 0, %s39
      %s43 = sphi 0, %s42
      %s59 = sphi 0, %s43
      %s65 = sphi 0, %s67
      %s68 = sphi 0, %s65
      %s69 = sphi 0, %s68
      %s85 = sphi 0, %s69
      %s89 = sphi 0, %s89
      %s91 = sphi 0, %s89
      %s92 = sphi 0, %s91
      %s106 = sphi 0, %s92
      %s110 = sphi 0, %s110
      %s112 = sphi 0, %s110
      %s113 = sphi 0, %s112
      %s127 = sphi 0, %s113
      %s131 = sphi 0, %s131
      %s133 = sphi 0, %s131
      %s134 = sphi 0, %s133
      %s148 = sphi 0, %s134
      %s152 = sphi 0, %s152
      %s154 = sphi 0, %s152
      %s155 = sphi 0, %s154
      %s169 = sphi 0, %s155
      %s177 = sphi 0, %s179
      %s180 = sphi 0, %s177
      %s181 = sphi 0, %s180
      %s197 = sphi 0, %s181
      %s205 = sphi 0, %s207
      %s208 = sphi 0, %s205
      %s209 = sphi 0, %s208
      %s225 = sphi 0, %s209
      %s233 = sphi 0, %s235
      %s236 = sphi 0, %s233
      %s237 = sphi 0, %s236
      %s253 = sphi 0, %s237
    $region4: #{_lambda_.17} parent=1 // loop_header_branch
      %20 = sbr.rel (%p18) target = $region8
    $region5: #{_lambda_.17} parent=1 // loop_body
      %s22 = ssub.s32 %s17, 1
      %s23 = ssub.s32 %s17, 2
      %s30 = sadd.s32 1, %s25
      %p31 = scmp.ge.s32.totalorder %s30, 1
      %s32 = scalar_select %p31, 0, %s30
      %s33 = sadd.s32 1, %s24
      %s34 = scalar_select %p31, %s33, %s24
      %p35 = scmp.ge.s32.totalorder %s34, 2
      %s36 = scalar_select %p35, 0, %s34
      %s37 = ssub.s32 %s24, %s36
      %p38 = scmp.eq.s32.totalorder %s37, 0
      %s40 = sadd.s32 %s39, 1
      %s41 = scalar_select %p38, %s39, %s40
      %p44 = pneg %p38
      %p45 = scmp.eq.s32.totalorder %s17, 1
      %p46 = por %p44, %p45
      %p47 = scmp.ne.s32.totalorder %s39, %s42
      %p48 = scmp.eq.s32.totalorder %s17, 0
      %p49 = por %p47, %p48
      %p50 = scmp.ne.s32.totalorder %s39, %s42
      %p51 = scmp.eq.s32.totalorder %s22, 1
      %p52 = por %p50, %p51
      %p53 = scmp.ne.s32.totalorder %s42, %s43
      %p54 = scmp.eq.s32.totalorder %s22, 0
      %p55 = por %p53, %p54
      %p56 = scmp.ne.s32.totalorder %s42, %s43
      %p57 = scmp.eq.s32.totalorder %s23, 1
      %p58 = por %p56, %p57
      %p60 = scmp.ne.s32.totalorder %s43, %s59
      %p61 = scmp.eq.s32.totalorder %s23, 0
      %p62 = por %p60, %p61
      %s63 = ssub.s32 %s24, %s36
      %p64 = scmp.eq.s32.totalorder %s63, 0
      %s66 = sadd.s32 %s65, 1
      %s67 = scalar_select %p64, %s65, %s66
      %p70 = pneg %p64
      %p71 = scmp.eq.s32.totalorder %s17, 1
      %p72 = por %p70, %p71
      %p73 = scmp.ne.s32.totalorder %s65, %s68
      %p74 = scmp.eq.s32.totalorder %s17, 0
      %p75 = por %p73, %p74
      %p76 = scmp.ne.s32.totalorder %s65, %s68
      %p77 = scmp.eq.s32.totalorder %s22, 1
      %p78 = por %p76, %p77
      %p79 = scmp.ne.s32.totalorder %s68, %s69
      %p80 = scmp.eq.s32.totalorder %s22, 0
      %p81 = por %p79, %p80
      %p82 = scmp.ne.s32.totalorder %s68, %s69
      %p83 = scmp.eq.s32.totalorder %s23, 1
      %p84 = por %p82, %p83
      %p86 = scmp.ne.s32.totalorder %s69, %s85
      %p87 = scmp.eq.s32.totalorder %s23, 0
      %p88 = por %p86, %p87
      %s90 = sadd.s32 %s89, 1
      %p93 = scmp.eq.s32.totalorder %s17, 1
      %p94 = scmp.ne.s32.totalorder %s89, %s91
      %p95 = scmp.eq.s32.totalorder %s17, 0
      %p96 = por %p94, %p95
      %p97 = scmp.ne.s32.totalorder %s89, %s91
      %p98 = scmp.eq.s32.totalorder %s22, 1
      %p99 = por %p97, %p98
      %p100 = scmp.ne.s32.totalorder %s91, %s92
      %p101 = scmp.eq.s32.totalorder %s22, 0
      %p102 = por %p100, %p101
      %p103 = scmp.ne.s32.totalorder %s91, %s92
      %p104 = scmp.eq.s32.totalorder %s23, 1
      %p105 = por %p103, %p104
      %p107 = scmp.ne.s32.totalorder %s92, %s106
      %p108 = scmp.eq.s32.totalorder %s23, 0
      %p109 = por %p107, %p108
      %s111 = sadd.s32 %s110, 1
      %p114 = scmp.eq.s32.totalorder %s17, 1
      %p115 = scmp.ne.s32.totalorder %s110, %s112
      %p116 = scmp.eq.s32.totalorder %s17, 0
      %p117 = por %p115, %p116
      %p118 = scmp.ne.s32.totalorder %s110, %s112
      %p119 = scmp.eq.s32.totalorder %s22, 1
      %p120 = por %p118, %p119
      %p121 = scmp.ne.s32.totalorder %s112, %s113
      %p122 = scmp.eq.s32.totalorder %s22, 0
      %p123 = por %p121, %p122
      %p124 = scmp.ne.s32.totalorder %s112, %s113
      %p125 = scmp.eq.s32.totalorder %s23, 1
      %p126 = por %p124, %p125
      %p128 = scmp.ne.s32.totalorder %s113, %s127
      %p129 = scmp.eq.s32.totalorder %s23, 0
      %p130 = por %p128, %p129
      %s132 = sadd.s32 %s131, 1
      %p135 = scmp.eq.s32.totalorder %s17, 1
      %p136 = scmp.ne.s32.totalorder %s131, %s133
      %p137 = scmp.eq.s32.totalorder %s17, 0
      %p138 = por %p136, %p137
      %p139 = scmp.ne.s32.totalorder %s131, %s133
      %p140 = scmp.eq.s32.totalorder %s22, 1
      %p141 = por %p139, %p140
      %p142 = scmp.ne.s32.totalorder %s133, %s134
      %p143 = scmp.eq.s32.totalorder %s22, 0
      %p144 = por %p142, %p143
      %p145 = scmp.ne.s32.totalorder %s133, %s134
      %p146 = scmp.eq.s32.totalorder %s23, 1
      %p147 = por %p145, %p146
      %p149 = scmp.ne.s32.totalorder %s134, %s148
      %p150 = scmp.eq.s32.totalorder %s23, 0
      %p151 = por %p149, %p150
      %s153 = sadd.s32 %s152, 1
      %p156 = scmp.eq.s32.totalorder %s17, 1
      %p157 = scmp.ne.s32.totalorder %s152, %s154
      %p158 = scmp.eq.s32.totalorder %s17, 0
      %p159 = por %p157, %p158
      %p160 = scmp.ne.s32.totalorder %s152, %s154
      %p161 = scmp.eq.s32.totalorder %s22, 1
      %p162 = por %p160, %p161
      %p163 = scmp.ne.s32.totalorder %s154, %s155
      %p164 = scmp.eq.s32.totalorder %s22, 0
      %p165 = por %p163, %p164
      %p166 = scmp.ne.s32.totalorder %s154, %s155
      %p167 = scmp.eq.s32.totalorder %s23, 1
      %p168 = por %p166, %p167
      %p170 = scmp.ne.s32.totalorder %s155, %s169
      %p171 = scmp.eq.s32.totalorder %s23, 0
      %p172 = por %p170, %p171
      %s173 = ssub.s32 %s24, %s36
      %s174 = ssub.s32 %s25, %s32
      %s175 = sor.u32 %s173, %s174
      %p176 = scmp.eq.s32.totalorder %s175, 0
      %s178 = sadd.s32 %s177, 1
      %s179 = scalar_select %p176, %s177, %s178
      %p182 = pneg %p176
      %p183 = scmp.eq.s32.totalorder %s17, 1
      %p184 = por %p182, %p183
      %p185 = scmp.ne.s32.totalorder %s177, %s180
      %p186 = scmp.eq.s32.totalorder %s17, 0
      %p187 = por %p185, %p186
      %p188 = scmp.ne.s32.totalorder %s177, %s180
      %p189 = scmp.eq.s32.totalorder %s22, 1
      %p190 = por %p188, %p189
      %p191 = scmp.ne.s32.totalorder %s180, %s181
      %p192 = scmp.eq.s32.totalorder %s22, 0
      %p193 = por %p191, %p192
      %p194 = scmp.ne.s32.totalorder %s180, %s181
      %p195 = scmp.eq.s32.totalorder %s23, 1
      %p196 = por %p194, %p195
      %p198 = scmp.ne.s32.totalorder %s181, %s197
      %p199 = scmp.eq.s32.totalorder %s23, 0
      %p200 = por %p198, %p199
      %s201 = ssub.s32 %s24, %s36
      %s202 = ssub.s32 %s25, %s32
      %s203 = sor.u32 %s201, %s202
      %p204 = scmp.eq.s32.totalorder %s203, 0
      %s206 = sadd.s32 %s205, 1
      %s207 = scalar_select %p204, %s205, %s206
      %p210 = pneg %p204
      %p211 = scmp.eq.s32.totalorder %s17, 1
      %p212 = por %p210, %p211
      %p213 = scmp.ne.s32.totalorder %s205, %s208
      %p214 = scmp.eq.s32.totalorder %s17, 0
      %p215 = por %p213, %p214
      %p216 = scmp.ne.s32.totalorder %s205, %s208
      %p217 = scmp.eq.s32.totalorder %s22, 1
      %p218 = por %p216, %p217
      %p219 = scmp.ne.s32.totalorder %s208, %s209
      %p220 = scmp.eq.s32.totalorder %s22, 0
      %p221 = por %p219, %p220
      %p222 = scmp.ne.s32.totalorder %s208, %s209
      %p223 = scmp.eq.s32.totalorder %s23, 1
      %p224 = por %p222, %p223
      %p226 = scmp.ne.s32.totalorder %s209, %s225
      %p227 = scmp.eq.s32.totalorder %s23, 0
      %p228 = por %p226, %p227
      %s229 = ssub.s32 %s24, %s36
      %s230 = ssub.s32 %s25, %s32
      %s231 = sor.u32 %s229, %s230
      %p232 = scmp.eq.s32.totalorder %s231, 0
      %s234 = sadd.s32 %s233, 1
      %s235 = scalar_select %p232, %s233, %s234
      %p238 = pneg %p232
      %p239 = scmp.eq.s32.totalorder %s17, 1
      %p240 = por %p238, %p239
      %p241 = scmp.ne.s32.totalorder %s233, %s236
      %p242 = scmp.eq.s32.totalorder %s17, 0
      %p243 = por %p241, %p242
      %p244 = scmp.ne.s32.totalorder %s233, %s236
      %p245 = scmp.eq.s32.totalorder %s22, 1
      %p246 = por %p244, %p245
      %p247 = scmp.ne.s32.totalorder %s236, %s237
      %p248 = scmp.eq.s32.totalorder %s22, 0
      %p249 = por %p247, %p248
      %p250 = scmp.ne.s32.totalorder %s236, %s237
      %p251 = scmp.eq.s32.totalorder %s23, 1
      %p252 = por %p250, %p251
      %p254 = scmp.ne.s32.totalorder %s237, %s253
      %p255 = scmp.eq.s32.totalorder %s23, 0
      %p256 = por %p254, %p255
      %p257 = scmp.le.s32.totalorder 1, %s17
      %p258 = scmp.lt.s32.totalorder %s17, 3
      %p259 = pnand %p257, %p258
      %p260 = pneg %p259
      // Predicated region
      $region9: #{_lambda_.17} parent=5 // pred_check
        _
      $region10: #{_lambda_.17} parent=5 // pred_check_branch
        %262 = sbr.rel (%p259) target = $region12
      $region11: #{_lambda_.17} parent=5 // pred_region
        %s263 = ssub.s32 %s17, 1
        // Predicated region
        $region13: #{_lambda_.17} parent=11 // pred_check
          %p264 = pneg %p102
        $region14: #{_lambda_.17} parent=11 // pred_check_branch
          %266 = sbr.rel (%p264) target = $region16
        $region15: #{_lambda_.17} parent=11 // pred_region
          _
        $region16: #{_lambda_.17} parent=11 // pred_fallthru
          _
        // Predicated region
        $region17: #{_lambda_.17} parent=11 // pred_check
          %p267 = pneg %p123
        $region18: #{_lambda_.17} parent=11 // pred_check_branch
          %269 = sbr.rel (%p267) target = $region20
        $region19: #{_lambda_.17} parent=11 // pred_region
          _
        $region20: #{_lambda_.17} parent=11 // pred_fallthru
          _
        // Predicated region
        $region21: #{_lambda_.17} parent=11 // pred_check
          %p270 = pneg %p144
        $region22: #{_lambda_.17} parent=11 // pred_check_branch
          %272 = sbr.rel (%p270) target = $region24
        $region23: #{_lambda_.17} parent=11 // pred_region
          _
        $region24: #{_lambda_.17} parent=11 // pred_fallthru
          _
        // Predicated region
        $region25: #{_lambda_.17} parent=11 // pred_check
          %p273 = pneg %p165
        $region26: #{_lambda_.17} parent=11 // pred_check_branch
          %275 = sbr.rel (%p273) target = $region28
        $region27: #{_lambda_.17} parent=11 // pred_region
          _
        $region28: #{_lambda_.17} parent=11 // pred_fallthru
          _
      $region12: #{_lambda_.17} parent=5 // pred_fallthru
        _
      %p276 = scmp.lt.s32.totalorder %s17, 2
      // Predicated region
      $region29: #{_lambda_.17} parent=5 // pred_check
        %p277 = pneg %p276
      $region30: #{_lambda_.17} parent=5 // pred_check_branch
        %279 = sbr.rel (%p277) target = $region32
      $region31: #{_lambda_.17} parent=5 // pred_region
        // Predicated region
        $region33: #{_lambda_.17} parent=31 // pred_check
          %p280 = pneg %p49
        $region34: #{_lambda_.17} parent=31 // pred_check_branch
          %282 = sbr.rel (%p280) target = $region36
        $region35: #{_lambda_.17} parent=31 // pred_region
          %p283 = scmp.lt.s32.totalorder %s24, 1
          %s284 = scalar_select %p283, %s24, 1
          %s285 = smul.addr %s284, 4
          %s286 = scalar_lea.vmem %s0, %s285
        $region36: #{_lambda_.17} parent=31 // pred_fallthru
          _
        // Predicated region
        $region37: #{_lambda_.17} parent=31 // pred_check
          %p287 = pneg %p75
        $region38: #{_lambda_.17} parent=31 // pred_check_branch
          %289 = sbr.rel (%p287) target = $region40
        $region39: #{_lambda_.17} parent=31 // pred_region
          %p290 = scmp.lt.s32.totalorder %s24, 1
          %s291 = scalar_select %p290, %s24, 1
          %s292 = smul.addr %s291, 8
          %s293 = scalar_lea.vmem %s1, %s292
        $region40: #{_lambda_.17} parent=31 // pred_fallthru
          _
        // Predicated region
        $region41: #{_lambda_.17} parent=31 // pred_check
          %p294 = pneg %p187
        $region42: #{_lambda_.17} parent=31 // pred_check_branch
          %296 = sbr.rel (%p294) target = $region44
        $region43: #{_lambda_.17} parent=31 // pred_region
          %s297 = smul.u32 4, %s25
          %p298 = scmp.lt.s32.totalorder %s24, 1
          %s299 = scalar_select %p298, %s24, 1
          %p300 = scmp.lt.s32.totalorder %s297, 3
          %s301 = scalar_select %p300, %s297, 3
          %s302 = smul.addr %s301, 2
          %s303 = smul.addr %s299, 8
          %s304 = sadd.s32 %s302, %s303
          %s305 = smul.addr %s304, 8
          %s306 = scalar_lea.vmem %s6, %s305
          %s307 = smul.u32 4, %s25
        $region44: #{_lambda_.17} parent=31 // pred_fallthru
          _
        // Predicated region
        $region45: #{_lambda_.17} parent=31 // pred_check
          %p308 = pneg %p215
        $region46: #{_lambda_.17} parent=31 // pred_check_branch
          %310 = sbr.rel (%p308) target = $region48
        $region47: #{_lambda_.17} parent=31 // pred_region
          %s311 = smul.u32 4, %s25
          %p312 = scmp.lt.s32.totalorder %s24, 1
          %s313 = scalar_select %p312, %s24, 1
          %p314 = scmp.lt.s32.totalorder %s311, 3
          %s315 = scalar_select %p314, %s311, 3
          %s316 = smul.addr %s315, 2
          %s317 = smul.addr %s313, 8
          %s318 = sadd.s32 %s316, %s317
          %s319 = smul.addr %s318, 8
          %s320 = scalar_lea.vmem %s7, %s319
          %s321 = smul.u32 4, %s25
        $region48: #{_lambda_.17} parent=31 // pred_fallthru
          _
      $region32: #{_lambda_.17} parent=5 // pred_fallthru
        _
      %p322 = scmp.le.s32.totalorder 1, %s17
      %p323 = scmp.lt.s32.totalorder %s17, 3
      %p324 = pnand %p322, %p323
      %p325 = pneg %p324
      // Predicated region
      $region49: #{_lambda_.17} parent=5 // pred_check
        _
      $region50: #{_lambda_.17} parent=5 // pred_check_branch
        %327 = sbr.rel (%p324) target = $region52
      $region51: #{_lambda_.17} parent=5 // pred_region
        %s328 = ssub.s32 %s17, 1
        %p329 = scmp.lt.s32.totalorder %s26, 1
        %s330 = scalar_select %p329, %s26, 1
        %s331 = smul.addr %s330, 4
        %s332 = scalar_lea.vmem %s0, %s331
        %p333 = pneg %p55
        %p334 = pneg %p52
        %p335 = scmp.lt.s32.totalorder %s26, 1
        %s336 = scalar_select %p335, %s26, 1
        %s337 = smul.addr %s336, 8
        %s338 = scalar_lea.vmem %s1, %s337
        %p339 = pneg %p81
        %p340 = pneg %p78
        %p341 = pneg %p102
        %p342 = pneg %p99
        %p343 = pneg %p123
        %p344 = pneg %p120
        %p345 = pneg %p144
        %p346 = pneg %p141
        %p347 = pneg %p165
        %p348 = pneg %p162
        %s349 = smul.u32 4, %s27
        %p350 = scmp.lt.s32.totalorder %s26, 1
        %s351 = scalar_select %p350, %s26, 1
        %p352 = scmp.lt.s32.totalorder %s349, 3
        %s353 = scalar_select %p352, %s349, 3
        %s354 = smul.addr %s353, 2
        %s355 = smul.addr %s351, 8
        %s356 = sadd.s32 %s354, %s355
        %s357 = smul.addr %s356, 8
        %s358 = scalar_lea.vmem %s6, %s357
        %p359 = pneg %p193
        %p360 = pneg %p190
        %s361 = smul.u32 4, %s27
        %p362 = scmp.lt.s32.totalorder %s26, 1
        %s363 = scalar_select %p362, %s26, 1
        %p364 = scmp.lt.s32.totalorder %s361, 3
        %s365 = scalar_select %p364, %s361, 3
        %s366 = smul.addr %s365, 2
        %s367 = smul.addr %s363, 8
        %s368 = sadd.s32 %s366, %s367
        %s369 = smul.addr %s368, 8
        %s370 = scalar_lea.vmem %s7, %s369
        %p371 = pneg %p221
        %p372 = pneg %p218
        %p373 = pneg %p249
        %p374 = pneg %p246
        %s375 = sand.u32 %s236, 1
        %s376 = scalar_lea.sflag [#allocation3], %s375
        %s377 = sand.u32 %s236, 1
        %s378 = smul.addr %s377, 64
        %s379 = scalar_lea.vmem [#allocation2], %s378
        %p380 = scmp.lt.s32.totalorder %s26, 1
        %s381 = scalar_select %p380, %s26, 1
        %s382 = smul.addr %s381, 4
        %s383 = scalar_lea.vmem %s0, %s382
        %p384 = scmp.lt.s32.totalorder %s26, 1
        %s385 = scalar_select %p384, %s26, 1
        %s386 = smul.addr %s385, 8
        %s387 = scalar_lea.vmem %s1, %s386
        %s388 = smul.u32 4, %s27
        %p389 = scmp.lt.s32.totalorder %s26, 1
        %s390 = scalar_select %p389, %s26, 1
        %p391 = scmp.lt.s32.totalorder %s388, 3
        %s392 = scalar_select %p391, %s388, 3
        %s393 = smul.addr %s392, 2
        %s394 = smul.addr %s390, 8
        %s395 = sadd.s32 %s393, %s394
        %s396 = smul.addr %s395, 8
        %s397 = scalar_lea.vmem %s6, %s396
        %s398 = smul.u32 4, %s27
        %s399 = smul.u32 4, %s27
        %p400 = scmp.lt.s32.totalorder %s26, 1
        %s401 = scalar_select %p400, %s26, 1
        %p402 = scmp.lt.s32.totalorder %s399, 3
        %s403 = scalar_select %p402, %s399, 3
        %s404 = smul.addr %s403, 2
        %s405 = smul.addr %s401, 8
        %s406 = sadd.s32 %s404, %s405
        %s407 = smul.addr %s406, 8
        %s408 = scalar_lea.vmem %s7, %s407
        %s409 = smul.u32 4, %s27
        %s410 = smul.u32 4, %s27
        %v411 = vld [vmem:[%s2] sm:$0xff]
        %v412 = vld [vmem:[%s383] sm:$0xf]
        %vm413 = vcmask 31744
        %v415 = vsel %vm413, %v411, 0
        %vm417 = vcmask 1043456
        %v419 = vsel %vm417, %v412, 0
        %421 = vmatprep.subr.mxu0 0.0
        %422 = vmatpush1.msra.mxu0 %v419
        %423 = vmatprep.subr.mxu0 0.0
        %424 = vmatpush1.msra.mxu0 0.0
        %425 = vmatprep.subr.mxu0 0.0
        %426 = vmatpush1.msra.mxu0 0.0
        %427 = vmatprep.subr.mxu0 0.0
        %428 = vmatpush1.msra.mxu0 0.0
        %429 = vmatprep.subr.mxu0 0.0
        %430 = vmatpush1.msra.mxu0 0.0
        %431 = vmatprep.subr.mxu0 0.0
        %432 = vmatpush1.msra.mxu0 0.0
        %433 = vmatprep.subr.mxu0 0.0
        %434 = vmatpush1.msra.mxu0 0.0
        %435 = vmatprep.subr.mxu0 0.0
        %436 = vmatpush1.msra.mxu0 0.0
        %437 = vmatprep.subr.mxu0 0.0
        %438 = vmatpush1.msra.mxu0 0.0
        %439 = vmatprep.subr.mxu0 0.0
        %440 = vmatpush1.msra.mxu0 0.0
        %441 = vmatprep.subr.mxu0 0.0
        %442 = vmatpush1.msra.mxu0 0.0
        %443 = vmatprep.subr.mxu0 0.0
        %444 = vmatpush1.msra.mxu0 0.0
        %445 = vmatprep.subr.mxu0 0.0
        %446 = vmatpush1.msra.mxu0 0.0
        %447 = vmatprep.subr.mxu0 0.0
        %448 = vmatpush1.msra.mxu0 0.0
        %449 = vmatprep.subr.mxu0 0.0
        %450 = vmatpush1.msra.mxu0 0.0
        %451 = vmatprep.subr.mxu0 0.0
        %452 = vmatpush1.msra.mxu0 0.0
        %453 = vmatprep.subr.mxu0 0.0
        %454 = vmatpush1.msra.mxu0 0.0
        %455 = vmatprep.subr.mxu0 0.0
        %456 = vmatpush1.msra.mxu0 0.0
        %457 = vmatprep.subr.mxu0 0.0
        %458 = vmatpush1.msra.mxu0 0.0
        %459 = vmatprep.subr.mxu0 0.0
        %460 = vmatpush1.msra.mxu0 0.0
        %461 = vmatprep.subr.mxu0 0.0
        %462 = vmatpush1.msra.mxu0 0.0
        %463 = vmatprep.subr.mxu0 0.0
        %464 = vmatpush1.msra.mxu0 0.0
        %465 = vmatprep.subr.mxu0 0.0
        %466 = vmatpush1.msra.mxu0 0.0
        %467 = vmatprep.subr.mxu0 0.0
        %468 = vmatpush1.msra.mxu0 0.0
        %469 = vmatprep.subr.mxu0 0.0
        %470 = vmatpush1.msra.mxu0 0.0
        %471 = vmatprep.subr.mxu0 0.0
        %472 = vmatpush1.msra.mxu0 0.0
        %473 = vmatprep.subr.mxu0 0.0
        %474 = vmatpush1.msra.mxu0 0.0
        %475 = vmatprep.subr.mxu0 0.0
        %476 = vmatpush1.msra.mxu0 0.0
        %477 = vmatprep.subr.mxu0 0.0
        %478 = vmatpush1.msra.mxu0 0.0
        %479 = vmatprep.subr.mxu0 0.0
        %480 = vmatpush1.msra.mxu0 0.0
        %481 = vmatprep.subr.mxu0 0.0
        %482 = vmatpush1.msra.mxu0 0.0
        %483 = vmatprep.subr.mxu0 0.0
        %484 = vmatpush1.msra.mxu0 0.0
        %485 = vmatprep.mubr.f32.mxu0 0.0
        %486 = vmatmul.mubr.f32.gmra.mrb[0].mxu0 %v415
        %v487 = vpop.f32.mrb[0].mxu0
        %v488 = vadd.f32 0.0, %v487
        %v489 = vpop.f32.mrb[0].mxu0
        %490 = vdwg.mxu0
        %v491 = vld [vmem:[%s3] sm:$0xf]
        %v492 = vld [vmem:[%s387] sm:$0xff]
        %v494 = vsel %vm413, %v488, 0
        %v497 = vsel %vm417, %v491, 0
        %499 = vmatprep.subr.mxu0 0.0
        %500 = vmatpush1.msra.mxu0 %v497
        %501 = vmatprep.subr.mxu0 0.0
        %502 = vmatpush1.msra.mxu0 0.0
        %503 = vmatprep.subr.mxu0 0.0
        %504 = vmatpush1.msra.mxu0 0.0
        %505 = vmatprep.subr.mxu0 0.0
        %506 = vmatpush1.msra.mxu0 0.0
        %507 = vmatprep.subr.mxu0 0.0
        %508 = vmatpush1.msra.mxu0 0.0
        %509 = vmatprep.subr.mxu0 0.0
        %510 = vmatpush1.msra.mxu0 0.0
        %511 = vmatprep.subr.mxu0 0.0
        %512 = vmatpush1.msra.mxu0 0.0
        %513 = vmatprep.subr.mxu0 0.0
        %514 = vmatpush1.msra.mxu0 0.0
        %515 = vmatprep.subr.mxu0 0.0
        %516 = vmatpush1.msra.mxu0 0.0
        %517 = vmatprep.subr.mxu0 0.0
        %518 = vmatpush1.msra.mxu0 0.0
        %519 = vmatprep.subr.mxu0 0.0
        %520 = vmatpush1.msra.mxu0 0.0
        %521 = vmatprep.subr.mxu0 0.0
        %522 = vmatpush1.msra.mxu0 0.0
        %523 = vmatprep.subr.mxu0 0.0
        %524 = vmatpush1.msra.mxu0 0.0
        %525 = vmatprep.subr.mxu0 0.0
        %526 = vmatpush1.msra.mxu0 0.0
        %527 = vmatprep.subr.mxu0 0.0
        %528 = vmatpush1.msra.mxu0 0.0
        %529 = vmatprep.subr.mxu0 0.0
        %530 = vmatpush1.msra.mxu0 0.0
        %531 = vmatprep.subr.mxu0 0.0
        %532 = vmatpush1.msra.mxu0 0.0
        %533 = vmatprep.subr.mxu0 0.0
        %534 = vmatpush1.msra.mxu0 0.0
        %535 = vmatprep.subr.mxu0 0.0
        %536 = vmatpush1.msra.mxu0 0.0
        %537 = vmatprep.subr.mxu0 0.0
        %538 = vmatpush1.msra.mxu0 0.0
        %539 = vmatprep.subr.mxu0 0.0
        %540 = vmatpush1.msra.mxu0 0.0
        %541 = vmatprep.subr.mxu0 0.0
        %542 = vmatpush1.msra.mxu0 0.0
        %543 = vmatprep.subr.mxu0 0.0
        %544 = vmatpush1.msra.mxu0 0.0
        %545 = vmatprep.subr.mxu0 0.0
        %546 = vmatpush1.msra.mxu0 0.0
        %547 = vmatprep.subr.mxu0 0.0
        %548 = vmatpush1.msra.mxu0 0.0
        %549 = vmatprep.subr.mxu0 0.0
        %550 = vmatpush1.msra.mxu0 0.0
        %551 = vmatprep.subr.mxu0 0.0
        %552 = vmatpush1.msra.mxu0 0.0
        %553 = vmatprep.subr.mxu0 0.0
        %554 = vmatpush1.msra.mxu0 0.0
        %555 = vmatprep.subr.mxu0 0.0
        %556 = vmatpush1.msra.mxu0 0.0
        %557 = vmatprep.subr.mxu0 0.0
        %558 = vmatpush1.msra.mxu0 0.0
        %559 = vmatprep.subr.mxu0 0.0
        %560 = vmatpush1.msra.mxu0 0.0
        %561 = vmatprep.subr.mxu0 0.0
        %562 = vmatpush1.msra.mxu0 0.0
        %563 = vmatprep.mubr.f32.mxu0 0.0
        %564 = vmatmul.mubr.f32.gmra.mrb[0].mxu0 %v494
        %v565 = vpop.f32.mrb[0].mxu0
        %v566 = vadd.f32 %v492, %v565
        %v567 = vpop.f32.mrb[0].mxu0
        %568 = vdwg.mxu0
        %v569 = vld [vmem:[%s4] sm:$0xff]
        %v570 = vld [vmem:[%s4 + $0x8] sm:$0xff]
        %vm571 = vcmask 64512
        %v573 = vsel %vm571, %v569, 0
        %v576 = vsel %vm571, %v570, 0
        %578 = vmatprep.subr.mxu0 0.0
        %579 = vmatpush1.msra.mxu0 %v566
        %580 = vmatprep.subr.mxu0 0.0
        %581 = vmatpush1.msra.mxu0 0.0
        %582 = vmatprep.subr.mxu0 0.0
        %583 = vmatpush1.msra.mxu0 0.0
        %584 = vmatprep.subr.mxu0 0.0
        %585 = vmatpush1.msra.mxu0 0.0
        %586 = vmatprep.subr.mxu0 0.0
        %587 = vmatpush1.msra.mxu0 0.0
        %588 = vmatprep.subr.mxu0 0.0
        %589 = vmatpush1.msra.mxu0 0.0
        %590 = vmatprep.subr.mxu0 0.0
        %591 = vmatpush1.msra.mxu0 0.0
        %592 = vmatprep.subr.mxu0 0.0
        %593 = vmatpush1.msra.mxu0 0.0
        %594 = vmatprep.subr.mxu0 0.0
        %595 = vmatpush1.msra.mxu0 0.0
        %596 = vmatprep.subr.mxu0 0.0
        %597 = vmatpush1.msra.mxu0 0.0
        %598 = vmatprep.subr.mxu0 0.0
        %599 = vmatpush1.msra.mxu0 0.0
        %600 = vmatprep.subr.mxu0 0.0
        %601 = vmatpush1.msra.mxu0 0.0
        %602 = vmatprep.subr.mxu0 0.0
        %603 = vmatpush1.msra.mxu0 0.0
        %604 = vmatprep.subr.mxu0 0.0
        %605 = vmatpush1.msra.mxu0 0.0
        %606 = vmatprep.subr.mxu0 0.0
        %607 = vmatpush1.msra.mxu0 0.0
        %608 = vmatprep.subr.mxu0 0.0
        %609 = vmatpush1.msra.mxu0 0.0
        %610 = vmatprep.subr.mxu0 0.0
        %611 = vmatpush1.msra.mxu0 0.0
        %612 = vmatprep.subr.mxu0 0.0
        %613 = vmatpush1.msra.mxu0 0.0
        %614 = vmatprep.subr.mxu0 0.0
        %615 = vmatpush1.msra.mxu0 0.0
        %616 = vmatprep.subr.mxu0 0.0
        %617 = vmatpush1.msra.mxu0 0.0
        %618 = vmatprep.subr.mxu0 0.0
        %619 = vmatpush1.msra.mxu0 0.0
        %620 = vmatprep.subr.mxu0 0.0
        %621 = vmatpush1.msra.mxu0 0.0
        %622 = vmatprep.subr.mxu0 0.0
        %623 = vmatpush1.msra.mxu0 0.0
        %624 = vmatprep.subr.mxu0 0.0
        %625 = vmatpush1.msra.mxu0 0.0
        %626 = vmatprep.subr.mxu0 0.0
        %627 = vmatpush1.msra.mxu0 0.0
        %628 = vmatprep.subr.mxu0 0.0
        %629 = vmatpush1.msra.mxu0 0.0
        %630 = vmatprep.subr.mxu0 0.0
        %631 = vmatpush1.msra.mxu0 0.0
        %632 = vmatprep.subr.mxu0 0.0
        %633 = vmatpush1.msra.mxu0 0.0
        %634 = vmatprep.subr.mxu0 0.0
        %635 = vmatpush1.msra.mxu0 0.0
        %636 = vmatprep.subr.mxu0 0.0
        %637 = vmatpush1.msra.mxu0 0.0
        %638 = vmatprep.subr.mxu0 0.0
        %639 = vmatpush1.msra.mxu0 0.0
        %640 = vmatprep.subr.mxu0 0.0
        %641 = vmatpush1.msra.mxu0 0.0
        %642 = vmatprep.mubr.f32.mxu0 0.0
        %643 = vmatmul.mubr.f32.gmra.mrb[0].mxu0 %v573
        %v644 = vpop.f32.mrb[0].mxu0
        %v645 = vadd.f32 0.0, %v644
        %v646 = vpop.f32.mrb[0].mxu0
        %647 = vmatprep.mubr.f32.mxu0 0.0
        %648 = vmatmul.mubr.f32.gmra.mrb[0].mxu0 %v576
        %v649 = vpop.f32.mrb[0].mxu0
        %v650 = vadd.f32 0.0, %v649
        %v651 = vpop.f32.mrb[0].mxu0
        %652 = vdwg.mxu0
        %v653 = vld [vmem:[%s5] sm:$0xff]
        %v655 = vsel %vm571, %v645, 0
        %v658 = vsel %vm571, %v650, 0
        %660 = vmatprep.subr.mxu0 0.0
        %661 = vmatpush1.msra.mxu0 %v653
        %662 = vmatprep.subr.mxu0 0.0
        %663 = vmatpush1.msra.mxu0 0.0
        %664 = vmatprep.subr.mxu0 0.0
        %665 = vmatpush1.msra.mxu0 0.0
        %666 = vmatprep.subr.mxu0 0.0
        %667 = vmatpush1.msra.mxu0 0.0
        %668 = vmatprep.subr.mxu0 0.0
        %669 = vmatpush1.msra.mxu0 0.0
        %670 = vmatprep.subr.mxu0 0.0
        %671 = vmatpush1.msra.mxu0 0.0
        %672 = vmatprep.subr.mxu0 0.0
        %673 = vmatpush1.msra.mxu0 0.0
        %674 = vmatprep.subr.mxu0 0.0
        %675 = vmatpush1.msra.mxu0 0.0
        %676 = vmatprep.subr.mxu0 0.0
        %677 = vmatpush1.msra.mxu0 0.0
        %678 = vmatprep.subr.mxu0 0.0
        %679 = vmatpush1.msra.mxu0 0.0
        %680 = vmatprep.subr.mxu0 0.0
        %681 = vmatpush1.msra.mxu0 0.0
        %682 = vmatprep.subr.mxu0 0.0
        %683 = vmatpush1.msra.mxu0 0.0
        %684 = vmatprep.subr.mxu0 0.0
        %685 = vmatpush1.msra.mxu0 0.0
        %686 = vmatprep.subr.mxu0 0.0
        %687 = vmatpush1.msra.mxu0 0.0
        %688 = vmatprep.subr.mxu0 0.0
        %689 = vmatpush1.msra.mxu0 0.0
        %690 = vmatprep.subr.mxu0 0.0
        %691 = vmatpush1.msra.mxu0 0.0
        %692 = vmatprep.subr.mxu0 0.0
        %693 = vmatpush1.msra.mxu0 0.0
        %694 = vmatprep.subr.mxu0 0.0
        %695 = vmatpush1.msra.mxu0 0.0
        %696 = vmatprep.subr.mxu0 0.0
        %697 = vmatpush1.msra.mxu0 0.0
        %698 = vmatprep.subr.mxu0 0.0
        %699 = vmatpush1.msra.mxu0 0.0
        %700 = vmatprep.subr.mxu0 0.0
        %701 = vmatpush1.msra.mxu0 0.0
        %702 = vmatprep.subr.mxu0 0.0
        %703 = vmatpush1.msra.mxu0 0.0
        %704 = vmatprep.subr.mxu0 0.0
        %705 = vmatpush1.msra.mxu0 0.0
        %706 = vmatprep.subr.mxu0 0.0
        %707 = vmatpush1.msra.mxu0 0.0
        %708 = vmatprep.subr.mxu0 0.0
        %709 = vmatpush1.msra.mxu0 0.0
        %710 = vmatprep.subr.mxu0 0.0
        %711 = vmatpush1.msra.mxu0 0.0
        %712 = vmatprep.subr.mxu0 0.0
        %713 = vmatpush1.msra.mxu0 0.0
        %714 = vmatprep.subr.mxu0 0.0
        %715 = vmatpush1.msra.mxu0 0.0
        %716 = vmatprep.subr.mxu0 0.0
        %717 = vmatpush1.msra.mxu0 0.0
        %718 = vmatprep.subr.mxu0 0.0
        %719 = vmatpush1.msra.mxu0 0.0
        %720 = vmatprep.subr.mxu0 0.0
        %721 = vmatpush1.msra.mxu0 0.0
        %722 = vmatprep.subr.mxu0 0.0
        %723 = vmatpush1.msra.mxu0 0.0
        %724 = vmatprep.mubr.f32.mxu0 0.0
        %725 = vmatmul.mubr.f32.gmra.mrb[0].mxu0 %v655
        %v726 = vpop.f32.mrb[0].mxu0
        %v727 = vadd.f32 0.0, %v726
        %v728 = vpop.f32.mrb[0].mxu0
        %729 = vmatprep.mubr.f32.mxu0 0.0
        %730 = vmatmul.mubr.f32.gmra.mrb[0].mxu0 %v658
        %v731 = vpop.f32.mrb[0].mxu0
        %v732 = vadd.f32 0.0, %v731
        %v733 = vpop.f32.mrb[0].mxu0
        %734 = vdwg.mxu0
        %v735 = vld [vmem:[%s397] sm:$0xff]
        %v736 = vld [vmem:[%s397 + $0x8] sm:$0xff]
        %v737 = vld [vmem:[%s397 + $0x10] sm:$0xff]
        %v738 = vld [vmem:[%s397 + $0x18] sm:$0xff]
        %v739 = vld [vmem:[%s397 + $0x20] sm:$0xff]
        %v740 = vld [vmem:[%s397 + $0x28] sm:$0xff]
        %v741 = vld [vmem:[%s397 + $0x30] sm:$0xff]
        %v742 = vld [vmem:[%s397 + $0x38] sm:$0xff]
        %v743 = vmul.f32 %v727, %v735
        %v744 = vmul.f32 %v732, %v736
        %v745 = vmul.f32 %v727, %v737
        %v746 = vmul.f32 %v732, %v738
        %v747 = vmul.f32 %v727, %v739
        %v748 = vmul.f32 %v732, %v740
        %v749 = vmul.f32 %v727, %v741
        %v750 = vmul.f32 %v732, %v742
        %v751 = vld [vmem:[%s408] sm:$0xff]
        %v752 = vld [vmem:[%s408 + $0x8] sm:$0xff]
        %v753 = vld [vmem:[%s408 + $0x10] sm:$0xff]
        %v754 = vld [vmem:[%s408 + $0x18] sm:$0xff]
        %v755 = vld [vmem:[%s408 + $0x20] sm:$0xff]
        %v756 = vld [vmem:[%s408 + $0x28] sm:$0xff]
        %v757 = vld [vmem:[%s408 + $0x30] sm:$0xff]
        %v758 = vld [vmem:[%s408 + $0x38] sm:$0xff]
        %v759 = vadd.f32 %v743, %v751
        %v760 = vadd.f32 %v744, %v752
        %v761 = vadd.f32 %v745, %v753
        %v762 = vadd.f32 %v746, %v754
        %v763 = vadd.f32 %v747, %v755
        %v764 = vadd.f32 %v748, %v756
        %v765 = vadd.f32 %v749, %v757
        %v766 = vadd.f32 %v750, %v758
        %vm767 = vcmask 130048
        %768 = vst.msk [vmem:[%s379] sm:$0xff] %vm767, %v759
        %769 = vst.msk [vmem:[%s379 + $0x8] sm:$0xff] %vm767, %v760
        %770 = vst.msk [vmem:[%s379 + $0x10] sm:$0xff] %vm767, %v761
        %771 = vst.msk [vmem:[%s379 + $0x18] sm:$0xff] %vm767, %v762
        %772 = vst.msk [vmem:[%s379 + $0x20] sm:$0xff] %vm767, %v763
        %773 = vst.msk [vmem:[%s379 + $0x28] sm:$0xff] %vm767, %v764
        %774 = vst.msk [vmem:[%s379 + $0x30] sm:$0xff] %vm767, %v765
        %775 = vst.msk [vmem:[%s379 + $0x38] sm:$0xff] %vm767, %v766
        %s776 = sand.u32 %s236, 1
        %s777 = scalar_lea.sflag [#allocation3], %s776
        %s778 = sand.u32 %s236, 1
        %s779 = smul.addr %s778, 64
        %s780 = scalar_lea.vmem [#allocation2], %s779
        // Predicated region
        $region53: #{_lambda_.17} parent=51 // pred_check
          %p781 = pneg %p246
        $region54: #{_lambda_.17} parent=51 // pred_check_branch
          %783 = sbr.rel (%p781) target = $region56
        $region55: #{_lambda_.17} parent=51 // pred_region
          %s784 = smul.u32 4, %s27
          %s786 = ssub.s32 1024, 1024
          %787 = vsyncadd %s777, %s786
          %s788 = smul.addr %s784, 2
          %s789 = smul.addr %s26, 8
          %s790 = sadd.s32 %s788, %s789
          %s791 = smul.addr %s790, 128
          %s792 = scalar_lea.hbm %s8, %s791
          %s793 = sshll.u32 %s780, 4
          %s794 = int_to_ptr.vmem [resolvable:$true] %s793
          %799 = dma.vmem_to_hbm [thread:$0]  %s794, 1024, %s792, %s777, 128, 128, 8
        $region56: #{_lambda_.17} parent=51 // pred_fallthru
          _
      $region52: #{_lambda_.17} parent=5 // pred_fallthru
        _
      %p800 = scmp.le.s32.totalorder 2, %s17
      // Predicated region
      $region57: #{_lambda_.17} parent=5 // pred_check
        %p801 = pneg %p800
      $region58: #{_lambda_.17} parent=5 // pred_check_branch
        %803 = sbr.rel (%p801) target = $region60
      $region59: #{_lambda_.17} parent=5 // pred_region
        %s804 = ssub.s32 %s17, 2
        // Predicated region
        $region61: #{_lambda_.17} parent=59 // pred_check
          %p805 = pneg %p252
        $region62: #{_lambda_.17} parent=59 // pred_check_branch
          %807 = sbr.rel (%p805) target = $region64
        $region63: #{_lambda_.17} parent=59 // pred_region
          %s808 = sand.u32 %s237, 1
          %s809 = scalar_lea.sflag [#allocation3], %s808
          %s810 = sand.u32 %s237, 1
          %s811 = smul.addr %s810, 64
          %s812 = scalar_lea.vmem [#allocation2], %s811
          %813 = dma.done %s809, 1024
        $region64: #{_lambda_.17} parent=59 // pred_fallthru
          _
      $region60: #{_lambda_.17} parent=5 // pred_fallthru
        _
    $region6: #{_lambda_.17} parent=1 // loop_footer
      %s21 = sadd.s32 1, %s17
    $region7: #{_lambda_.17} parent=1 // loop_footer_branch
      %16 = sbr.rel target = $region3
    $region8: #{_lambda_.17} parent=1 // loop_exit
      _
    %814 = vsyncpa [#allocation3], 1
    %s815 = scalar_lea.sflag [#allocation3], 1
    %816 = vsyncpa %s815, 1

</llo_original>
